<compile_context>
chip_gen: v6e
topology: v6e:2x2x1
jax: 0.10.0
libtpu: 0.0.40
codegen_flags: <defaults>
</compile_context>

<pallas_src>
from functools import partial

import jax
import jax.numpy as jnp
from jax.experimental import pallas as pl
from jax.experimental.pallas import tpu as pltpu


# ---------------------------------------------------------------------------
# helpers
# ---------------------------------------------------------------------------
def _round_up(x, m):
    return (x + m - 1) // m * m


def _pad2(x, rows, cols):
    r, c = x.shape
    return jnp.pad(x, ((0, rows - r), (0, cols - c)))


def _q(a):
    """bf16 quantize then back to f32 (mirrors the kernel streaming dtype)."""
    return a.astype(jnp.bfloat16).astype(jnp.float32)


def _largest_tile(total, cap, quantum=128):
    """Largest multiple of `quantum` that divides `total` and is <= cap."""
    best = quantum
    t = quantum
    limit = min(total, cap)
    while t <= limit:
        if total % t == 0:
            best = t
        t += quantum
    return best


# ---------------------------------------------------------------------------
# Pallas kernel 1: stacked H2GCN propagation  [A1; A2] @ h
# grid = (row tiles i [parallel], k tiles [arbitrary, last]); one MXU dot per
# step; f32 accumulator; BN statistics (col sum / sum-of-squares) emitted in
# the k==last epilogue.
# ---------------------------------------------------------------------------
def _conv_stats(res_f32):
    cp = res_f32.shape[1]
    colsum = jnp.sum(res_f32, axis=0, keepdims=True)            # (1, cp)
    colsq = jnp.sum(res_f32 * res_f32, axis=0, keepdims=True)   # (1, cp)
    pad = jnp.zeros((6, cp), jnp.float32)
    return jnp.concatenate([colsum, colsq, pad], axis=0)        # (8, cp)


def h2gcn_conv_kernel(a_ref, h_ref, o_ref, stat_ref, acc_ref):
    """Multi-step reduction path (nk > 1)."""
    k = pl.program_id(1)

    @pl.when(k == 0)
    def _():
        acc_ref[...] = jnp.zeros_like(acc_ref)

    acc_ref[...] += jnp.dot(a_ref[...], h_ref[...],
                            preferred_element_type=jnp.float32)

    @pl.when(k == pl.num_programs(1) - 1)
    def _():
        res = acc_ref[...].astype(o_ref.dtype)
        o_ref[...] = res
        # BN statistics epilogue over the (output-dtype-rounded) tile.
        stat_ref[0] = _conv_stats(res.astype(jnp.float32))


def h2gcn_conv_kernel_1k(a_ref, h_ref, o_ref, stat_ref):
    """Fast path: whole contraction in one k tile -> no accumulator scratch."""
    res = jnp.dot(a_ref[...], h_ref[...],
                  preferred_element_type=jnp.float32).astype(o_ref.dtype)
    o_ref[...] = res
    stat_ref[0] = _conv_stats(res.astype(jnp.float32))


def h2gcn_conv(a_stacked, h, *, out_dtype=jnp.bfloat16, tm=None, tk=None):
    """Propagation with the two normalized adjacencies pre-stacked as a
    (2*n_pad, n_pad) bf16 array (single MXU contraction per grid step).

    Returns (out, stats):
      out   : (2*n_pad, cp) in `out_dtype`; rows [0, n_pad) = A1 @ h,
              rows [n_pad, 2*n_pad) = A2 @ h (feature dim padded to cp).
      stats : (num_row_tiles, 8, cp) f32; row 0 = column sums, row 1 = column
              sums-of-squares of that row tile's output.
    """
    rows, n_pad = a_stacked.shape
    assert rows == 2 * n_pad
    c = h.shape[1]
    # NOTE: padding c (=32/64 at hidden=32) up to 128 lanes wastes MXU columns;
    # unavoidable for lane-dense stores, and the adjacency stream dominates.
    cp = _round_up(c, 128)

    if tm is None:
        # Divides n_pad (tiles never span the A1/A2 boundary) and keeps the
        # row grid >= 2 (megacore / 2 TCs on v7x).
        tm = _largest_tile(n_pad, 512)
    if tk is None:
        # Large reduction tile: fewer grid steps, larger DMAs on the HBM-bound
        # adjacency stream.
        tk = _largest_tile(n_pad, 2048)
    assert n_pad % tm == 0 and n_pad % tk == 0

    hp = _pad2(h, n_pad, cp).astype(jnp.bfloat16)

    grid0 = rows // tm
    nk = n_pad // tk

    out_bytes = jnp.dtype(out_dtype).itemsize
    # Explicit VMEM budget: triple-buffered A, double-buffered h, resident
    # acc/out/stats.  ~4-12 MiB at default tiles; cap at 48 MiB so a config
    # tuned here never overshoots v7x's 64 MiB per-core VMEM (v6e/v5e have
    # 128 MiB and could go higher with an even larger tk).
    vmem_need = (3 * tm * tk * 2 + 2 * tk * cp * 2
                 + tm * cp * 4 + 2 * tm * cp * out_bytes + 2 * 8 * cp * 4)
    vmem_limit = int(min(max(2 * vmem_need, 16 * 1024 * 1024),
                         48 * 1024 * 1024))

    out_shape = (jax.ShapeDtypeStruct((rows, cp), out_dtype),
                 jax.ShapeDtypeStruct((grid0, 8, cp), jnp.float32))
    flops = 2 * rows * n_pad * cp
    bytes_accessed = (rows * n_pad * 2              # stacked adjacency (bf16)
                      + grid0 * n_pad * cp * 2      # h re-read per row tile
                      + rows * cp * out_bytes       # propagation output
                      + grid0 * 8 * cp * 4)         # BN stats
    cost = pl.CostEstimate(flops=flops, transcendentals=0,
                           bytes_accessed=bytes_accessed)

    if nk == 1:
        out, stats = pl.pallas_call(
            h2gcn_conv_kernel_1k,
            out_shape=out_shape,
            grid_spec=pltpu.PrefetchScalarGridSpec(
                num_scalar_prefetch=0,
                grid=(grid0,),
                in_specs=[
                    pl.BlockSpec((tm, tk), lambda i: (i, 0)),
                    pl.BlockSpec((tk, cp), lambda i: (0, 0)),
                ],
                out_specs=[
                    pl.BlockSpec((tm, cp), lambda i: (i, 0)),
                    pl.BlockSpec((1, 8, cp), lambda i: (i, 0, 0)),
                ],
            ),
            compiler_params=pltpu.CompilerParams(
                dimension_semantics=("parallel",),
                vmem_limit_bytes=vmem_limit),
            cost_estimate=cost,
        )(a_stacked, hp)
    else:
        out, stats = pl.pallas_call(
            h2gcn_conv_kernel,
            out_shape=out_shape,
            grid_spec=pltpu.PrefetchScalarGridSpec(
                num_scalar_prefetch=0,
                grid=(grid0, nk),
                in_specs=[
                    # Triple-buffer the dominant adjacency stream (v5e sits on
                    # the roofline knee; harmless elsewhere).
                    pl.BlockSpec((tm, tk), lambda i, k: (i, k),
                                 pipeline_mode=pl.Buffered(3)),
                    pl.BlockSpec((tk, cp), lambda i, k: (k, 0)),
                ],
                out_specs=[
                    pl.BlockSpec((tm, cp), lambda i, k: (i, 0)),
                    pl.BlockSpec((1, 8, cp), lambda i, k: (i, 0, 0)),
                ],
                scratch_shapes=[pltpu.VMEM((tm, cp), jnp.float32)],
            ),
            compiler_params=pltpu.CompilerParams(
                dimension_semantics=("parallel", "arbitrary"),
                vmem_limit_bytes=vmem_limit),
            cost_estimate=cost,
        )(a_stacked, hp)

    return out, stats


# ---------------------------------------------------------------------------
# Pallas kernel 2: row-tiled linear  x @ W + b (+ optional relu)
# ---------------------------------------------------------------------------
def linear_kernel(x_ref, w_ref, b_ref, o_ref, *, relu):
    y = jnp.dot(x_ref[...], w_ref[...], preferred_element_type=jnp.float32)
    y = y + b_ref[...]
    if relu:
        y = jnp.maximum(y, 0.0)
    o_ref[...] = y.astype(o_ref.dtype)


def linear(x, w, b, *, relu=False, out_dtype=jnp.float32, tile=256):
    n, cin = x.shape
    cout = w.shape[1]
    kp = _round_up(cin, 128)
    cop = _round_up(cout, 128)

    # Row tiles are multiples of 16 (bf16 sublane packing); when there is
    # enough work, use >= 2 row tiles so both v7x TensorCores stay busy.
    n16 = _round_up(n, 16)
    if n16 <= 16:
        tm = n16
    else:
        tm = min(tile, _round_up(pl.cdiv(n16, 2), 16))
    n_pad = _round_up(n, tm)

    xp = _pad2(x, n_pad, kp).astype(jnp.bfloat16)
    wp = _pad2(w, kp, cop).astype(jnp.bfloat16)
    bp = _pad2(b.reshape(1, -1), 1, cop).astype(jnp.float32)

    out_bytes = jnp.dtype(out_dtype).itemsize
    out = pl.pallas_call(
        partial(linear_kernel, relu=relu),
        out_shape=jax.ShapeDtypeStruct((n_pad, cop), out_dtype),
        grid_spec=pltpu.PrefetchScalarGridSpec(
            num_scalar_prefetch=0,
            grid=(n_pad // tm,),
            in_specs=[
                pl.BlockSpec((tm, kp), lambda i: (i, 0)),
                pl.BlockSpec((kp, cop), lambda i: (0, 0)),
                pl.BlockSpec((1, cop), lambda i: (0, 0)),
            ],
            out_specs=pl.BlockSpec((tm, cop), lambda i: (i, 0)),
        ),
        compiler_params=pltpu.CompilerParams(
            dimension_semantics=("parallel",),
            vmem_limit_bytes=32 * 1024 * 1024,
        ),
        cost_estimate=pl.CostEstimate(
            flops=2 * n_pad * kp * cop, transcendentals=0,
            bytes_accessed=(n_pad * kp + kp * cop) * 2 + n_pad * cop * out_bytes),
    )(xp, wp, bp)
    return out[:n, :cout]


# ---------------------------------------------------------------------------
# adjacency construction (hoisted, cached) + BN glue
# ---------------------------------------------------------------------------
def _build_norm_adj(edge_index, n):
    """Mirrors H2GCN.init_adj on dense matrices."""
    src = edge_index[0]
    dst = edge_index[1]
    eye = jnp.eye(n, dtype=jnp.float32)
    # adj_t[dst, src] = 1 (messages flow src -> dst); remove self loops.
    a1 = jnp.zeros((n, n), jnp.float32).at[dst, src].set(1.0)
    a1 = a1 * (1.0 - eye)
    # Strict 2-hop exactly as in the PyTorch source: (A@A, diag removed) - A,
    # positives binarized to 1 (1-hop neighbors with >= 2 distinct 2-hop paths
    # are intentionally kept — this matches init_adj).  Path counting done in
    # bf16 (exact for 0/1 inputs with f32 accumulation) to halve the stream.
    paths2 = jnp.dot(a1.astype(jnp.bfloat16), a1.astype(jnp.bfloat16),
                     preferred_element_type=jnp.float32)
    paths2 = paths2 * (1.0 - eye)
    a2 = jnp.where(paths2 - a1 > 0.0, 1.0, 0.0)

    def gcn_norm(a):
        deg = jnp.sum(a, axis=1)
        dinv = jnp.where(deg > 0.0, jax.lax.rsqrt(deg), 0.0)
        return dinv[:, None] * a * dinv[None, :]

    return gcn_norm(a1), gcn_norm(a2)


def prepare_adjacency(edge_index, n):
    """Build the normalized adjacencies ONCE, stack A1 over A2, pad to lane
    multiples and cast to bf16.  The returned (2*n_pad, n_pad) array is reused
    by both conv layers and across forward calls."""
    n_pad = _round_up(n, 128)
    a1n, a2n = _build_norm_adj(edge_index, n)
    return jnp.concatenate([_pad2(a1n, n_pad, n_pad),
                            _pad2(a2n, n_pad, n_pad)],
                           axis=0).astype(jnp.bfloat16)


def batch_norm_apply(h, colsum, colsqsum, n, gamma, beta, eps=1e-5):
    """Apply BatchNorm1d (batch statistics) from precomputed column sums."""
    mean = colsum / n
    var = jnp.maximum(colsqsum / n - mean * mean, 0.0)
    scale = gamma * jax.lax.rsqrt(var + eps)
    shift = beta - mean * scale
    return h * scale + shift


# ---------------------------------------------------------------------------
# full H2GCN forward (num_layers=2, num_mlp_layers=1, use_bn=True)
# ---------------------------------------------------------------------------
def h2gcn_forward(x, a_stacked, params, *, conv_tm=None, conv_tk=None):
    n = x.shape[0]
    n_pad = a_stacked.shape[1]
    hidden = params["w_embed"].shape[1]

    # feature_embed (1-layer MLP) + relu, bf16 output       (Pallas linear)
    x0 = linear(x, params["w_embed"], params["b_embed"],
                relu=True, out_dtype=jnp.bfloat16)

    # conv 1: [A1@x0 | A2@x0]; BN stats come from the kernel epilogue.
    o1, s1 = h2gcn_conv(a_stacked, x0, tm=conv_tm, tk=conv_tk)
    nt = s1.shape[0] // 2                     # row tiles per adjacency half
    h1 = jnp.concatenate([o1[:n, :hidden], o1[n_pad:n_pad + n, :hidden]],
                         axis=1).astype(jnp.float32)
    colsum = jnp.concatenate([jnp.sum(s1[:nt, 0, :hidden], axis=0),
                              jnp.sum(s1[nt:, 0, :hidden], axis=0)])
    colsq = jnp.concatenate([jnp.sum(s1[:nt, 1, :hidden], axis=0),
                             jnp.sum(s1[nt:, 1, :hidden], axis=0)])
    # TODO(synk): batch statistics (training-mode BN); eval-mode running stats
    # would be threaded in as extra params.
    h1 = batch_norm_apply(h1, colsum, colsq, n,
                          params["bn_gamma"], params["bn_beta"])

    # conv 2 (last conv, no BN); the BN affine above is folded into the bf16
    # cast of h1 by XLA.  Stats output unused here (negligible cost).
    o2, _ = h2gcn_conv(a_stacked, h1, tm=conv_tm, tk=conv_tk)
    h2 = jnp.concatenate([o2[:n, :2 * hidden],
                          o2[n_pad:n_pad + n, :2 * hidden]],
                         axis=1).astype(jnp.float32)

    # JumpingKnowledge('cat') + final projection             (Pallas linear)
    xj = jnp.concatenate([x0.astype(jnp.float32), h1, h2], axis=1)
    return linear(xj, params["w_final"], params["b_final"], relu=False)


# ---------------------------------------------------------------------------
# pure-JAX reference (mirrors the bf16 streaming / output dtypes)
# ---------------------------------------------------------------------------
def h2gcn_reference(x, edge_index, params):
    n = x.shape[0]
    a1n, a2n = _build_norm_adj(edge_index, n)
    a1b, a2b = _q(a1n), _q(a2n)

    def lin(xx, w, b, relu=False, out_bf16=False):
        y = _q(xx) @ _q(w) + b[None, :]
        if relu:
            y = jnp.maximum(y, 0.0)
        return _q(y) if out_bf16 else y

    def conv(h):
        hb = _q(h)
        return _q(jnp.concatenate([a1b @ hb, a2b @ hb], axis=1))

    def bn(h, gamma, beta, eps=1e-5):
        mean = jnp.sum(h, axis=0) / n
        var = jnp.maximum(jnp.sum(h * h, axis=0) / n - mean * mean, 0.0)
        scale = gamma * jax.lax.rsqrt(var + eps)
        return h * scale + (beta - mean * scale)

    x0 = lin(x, params["w_embed"], params["b_embed"], relu=True, out_bf16=True)
    h1 = bn(conv(x0), params["bn_gamma"], params["bn_beta"])
    h2 = conv(h1)
    xj = jnp.concatenate([x0, h1, h2], axis=1)
    return lin(xj, params["w_final"], params["b_final"])


# ---------------------------------------------------------------------------
# self-test
# ---------------------------------------------------------------------------
if __name__ == "__main__":
    C_IN, HIDDEN, C_OUT = 12, 32, 7
    LAST_DIM = HIDDEN * (2 ** (2 + 1) - 1)     # hidden * 7 for num_layers=2

    def make_graph(n):
        # deterministic graph: bidirectional ring + chords (i, i+3)
        idx = jnp.arange(n)
        src = jnp.concatenate([idx, (idx + 1) % n, idx, (idx + 3) % n])
        dst = jnp.concatenate([(idx + 1) % n, idx, (idx + 3) % n, idx])
        return jnp.stack([src, dst], axis=0).astype(jnp.int32)

    def glorot(k, fan_in, fan_out):
        lim = (6.0 / (fan_in + fan_out)) ** 0.5
        return jax.random.uniform(k, (fan_in, fan_out), minval=-lim,
                                  maxval=lim, dtype=jnp.float32)

    key = jax.random.PRNGKey(0)
    kwe, kbe, kwf, kbf, kx1, kx2 = jax.random.split(key, 6)
    params = {
        "w_embed": glorot(kwe, C_IN, HIDDEN),
        "b_embed": 0.1 * jax.random.normal(kbe, (HIDDEN,), dtype=jnp.float32),
        "bn_gamma": 1.0 + 0.1 * jnp.arange(2 * HIDDEN, dtype=jnp.float32)
        / (2 * HIDDEN),
        "bn_beta": 0.05 * jnp.ones((2 * HIDDEN,), jnp.float32),
        "w_final": glorot(kwf, LAST_DIM, C_OUT),
        "b_final": 0.1 * jax.random.normal(kbf, (C_OUT,), dtype=jnp.float32),
    }

    # --- case 1: small graph -> fast-path conv kernel (single k step) -------
    n1 = 16
    x1 = jax.random.normal(kx1, (n1, C_IN), dtype=jnp.float32)
    e1 = make_graph(n1)
    adj1 = prepare_adjacency(e1, n1)                 # hoisted / cached once
    fwd1 = jax.jit(h2gcn_forward)
    out1 = jax.block_until_ready(fwd1(x1, adj1, params))
    ref1 = h2gcn_reference(x1, e1, params)
    assert out1.shape == (n1, C_OUT)
    err1 = float(jnp.max(jnp.abs(out1 - ref1)))
    assert jnp.allclose(out1, ref1, atol=2e-2, rtol=2e-2), err1

    # --- case 2: larger graph, forced small tiles -> exercises the ----------
    # accumulator (multi k-step) kernel, Buffered(3) adjacency stream and the
    # multi-row-tile BN statistics reduction.
    n2 = 300
    x2 = jax.random.normal(kx2, (n2, C_IN), dtype=jnp.float32)
    e2 = make_graph(n2)
    adj2 = prepare_adjacency(e2, n2)
    fwd2 = jax.jit(partial(h2gcn_forward, conv_tm=128, conv_tk=128))
    out2 = jax.block_until_ready(fwd2(x2, adj2, params))
    ref2 = h2gcn_reference(x2, e2, params)
    assert out2.shape == (n2, C_OUT)
    err2 = float(jnp.max(jnp.abs(out2 - ref2)))
    assert jnp.allclose(out2, ref2, atol=2e-2, rtol=2e-2), err2

    print("KERNEL_OK")
</pallas_src>

<mosaic_0001>
module attributes {stable_mosaic.version = 11 : i64} {
  func.func @linear_kernel(%arg0: i32, %arg1: memref<16x128xbf16, #tpu.memory_space<vmem>>, %arg2: memref<128x128xbf16, #tpu.memory_space<vmem>>, %arg3: memref<1x128xf32, #tpu.memory_space<vmem>>, %arg4: memref<16x128xbf16, #tpu.memory_space<vmem>>) attributes {dimension_semantics = [#tpu.dimension_semantics<parallel>], iteration_bounds = array<i64: 1>, scalar_prefetch = 0 : i64, scratch_operands = 0 : i64, tpu.core_type = #tpu.core_type<tc>, window_params = [{transform_indices = @transform_0, window_bounds = array<i64: 16, 128>}, {pipeline_mode = #tpu.pipeline_mode<synchronous>, transform_indices = @transform_1, window_bounds = array<i64: 128, 128>}, {pipeline_mode = #tpu.pipeline_mode<synchronous>, transform_indices = @transform_2, window_bounds = array<i64: 1, 128>}, {transform_indices = @transform_3, window_bounds = array<i64: 16, 128>}]} {
    %c0 = arith.constant 0 : index
    %c0_0 = arith.constant 0 : index
    %0 = vector.load %arg1[%c0, %c0_0] : memref<16x128xbf16, #tpu.memory_space<vmem>>, vector<16x128xbf16>
    %c0_1 = arith.constant 0 : index
    %c0_2 = arith.constant 0 : index
    %1 = vector.load %arg2[%c0_1, %c0_2] : memref<128x128xbf16, #tpu.memory_space<vmem>>, vector<128x128xbf16>
    %cst = arith.constant dense<0.000000e+00> : vector<16x128xf32>
    %2 = tpu.matmul %0, %1, %cst {dimension_numbers = #tpu.dot_dimension_numbers<[1], [0], [0], [1], [0, 0, 1, 1], [], []>} : vector<16x128xbf16>, vector<128x128xbf16>, vector<16x128xf32> -> vector<16x128xf32>
    %c0_3 = arith.constant 0 : index
    %c0_4 = arith.constant 0 : index
    %3 = vector.load %arg3[%c0_3, %c0_4] : memref<1x128xf32, #tpu.memory_space<vmem>>, vector<1x128xf32>
    %4 = vector.broadcast %3 : vector<1x128xf32> to vector<16x128xf32>
    %5 = arith.addf %2, %4 : vector<16x128xf32>
    %cst_5 = arith.constant 0.000000e+00 : f32
    %6 = vector.broadcast %cst_5 : f32 to vector<16x128xf32>
    %7 = arith.maximumf %5, %6 : vector<16x128xf32>
    %8 = arith.truncf %7 : vector<16x128xf32> to vector<16x128xbf16>
    %c0_6 = arith.constant 0 : index
    %c0_7 = arith.constant 0 : index
    %9 = vector.load %arg4[%c0_6, %c0_7] : memref<16x128xbf16, #tpu.memory_space<vmem>>, vector<16x128xbf16>
    tpu.vector_store %arg4[%c0_6, %c0_7], %8 {strides = array<i32>} : memref<16x128xbf16, #tpu.memory_space<vmem>>, vector<16x128xbf16>,
    return
  }
  func.func @transform_0(%arg0: i32) -> (i32, i32) {
    %c0_i32 = arith.constant 0 : i32
    %c0_i32_0 = arith.constant 0 : i32
    return %arg0, %c0_i32 : i32, i32
  }
  func.func @transform_1(%arg0: i32) -> (i32, i32) {
    %c0_i32 = arith.constant 0 : i32
    %c0_i32_0 = arith.constant 0 : i32
    %c0_i32_1 = arith.constant 0 : i32
    return %c0_i32, %c0_i32_0 : i32, i32
  }
  func.func @transform_2(%arg0: i32) -> (i32, i32) {
    %c0_i32 = arith.constant 0 : i32
    %c0_i32_0 = arith.constant 0 : i32
    %c0_i32_1 = arith.constant 0 : i32
    return %c0_i32, %c0_i32_0 : i32, i32
  }
  func.func @transform_3(%arg0: i32) -> (i32, i32) {
    %c0_i32 = arith.constant 0 : i32
    %c0_i32_0 = arith.constant 0 : i32
    return %arg0, %c0_i32 : i32, i32
  }
}

module attributes {stable_mosaic.version = 11 : i64} {
  func.func @h2gcn_conv_kernel_1k(%arg0: i32, %arg1: memref<128x128xbf16, #tpu.memory_space<vmem>>, %arg2: memref<128x128xbf16, #tpu.memory_space<vmem>>, %arg3: memref<128x128xbf16, #tpu.memory_space<vmem>>, %arg4: memref<1x8x128xf32, #tpu.memory_space<vmem>>) attributes {dimension_semantics = [#tpu.dimension_semantics<parallel>], iteration_bounds = array<i64: 2>, scalar_prefetch = 0 : i64, scratch_operands = 0 : i64, tpu.core_type = #tpu.core_type<tc>, window_params = [{transform_indices = @transform_0, window_bounds = array<i64: 128, 128>}, {pipeline_mode = #tpu.pipeline_mode<synchronous>, transform_indices = @transform_1, window_bounds = array<i64: 128, 128>}, {transform_indices = @transform_2, window_bounds = array<i64: 128, 128>}, {transform_indices = @transform_3, window_bounds = array<i64: 1, 8, 128>}]} {
    %c0 = arith.constant 0 : index
    %c0_0 = arith.constant 0 : index
    %0 = vector.load %arg1[%c0, %c0_0] : memref<128x128xbf16, #tpu.memory_space<vmem>>, vector<128x128xbf16>
    %c0_1 = arith.constant 0 : index
    %c0_2 = arith.constant 0 : index
    %1 = vector.load %arg2[%c0_1, %c0_2] : memref<128x128xbf16, #tpu.memory_space<vmem>>, vector<128x128xbf16>
    %cst = arith.constant dense<0.000000e+00> : vector<128x128xf32>
    %2 = tpu.matmul %0, %1, %cst {dimension_numbers = #tpu.dot_dimension_numbers<[1], [0], [0], [1], [0, 0, 1, 1], [], []>} : vector<128x128xbf16>, vector<128x128xbf16>, vector<128x128xf32> -> vector<128x128xf32>
    %3 = arith.truncf %2 : vector<128x128xf32> to vector<128x128xbf16>
    %c0_3 = arith.constant 0 : index
    %c0_4 = arith.constant 0 : index
    %4 = vector.load %arg3[%c0_3, %c0_4] : memref<128x128xbf16, #tpu.memory_space<vmem>>, vector<128x128xbf16>
    tpu.vector_store %arg3[%c0_3, %c0_4], %3 {strides = array<i32>} : memref<128x128xbf16, #tpu.memory_space<vmem>>, vector<128x128xbf16>,
    %5 = arith.extf %3 : vector<128x128xbf16> to vector<128x128xf32>
    %cst_5 = arith.constant dense<0.000000e+00> : vector<128xf32>
    %6 = vector.multi_reduction <add>, %5, %cst_5 [0] : vector<128x128xf32> to vector<128xf32>
    %7 = vector.shape_cast %6 : vector<128xf32> to vector<1x128xf32>
    %8 = arith.mulf %5, %5 : vector<128x128xf32>
    %cst_6 = arith.constant dense<0.000000e+00> : vector<128xf32>
    %9 = vector.multi_reduction <add>, %8, %cst_6 [0] : vector<128x128xf32> to vector<128xf32>
    %10 = vector.shape_cast %9 : vector<128xf32> to vector<1x128xf32>
    %cst_7 = arith.constant 0.000000e+00 : f32
    %11 = vector.broadcast %cst_7 : f32 to vector<6x128xf32>
    %12 = tpu.concatenate %7, %10, %11 in 0 : vector<1x128xf32>, vector<1x128xf32>, vector<6x128xf32> -> vector<8x128xf32>
    %c0_8 = arith.constant 0 : index
    %c0_9 = arith.constant 0 : index
    %c0_10 = arith.constant 0 : index
    %13 = vector.load %arg4[%c0_8, %c0_9, %c0_10] : memref<1x8x128xf32, #tpu.memory_space<vmem>>, vector<1x8x128xf32>
    %14 = vector.shape_cast %13 : vector<1x8x128xf32> to vector<8x128xf32>
    %15 = vector.shape_cast %12 : vector<8x128xf32> to vector<1x8x128xf32>
    tpu.vector_store %arg4[%c0_8, %c0_9, %c0_10], %15 {strides = array<i32>} : memref<1x8x128xf32, #tpu.memory_space<vmem>>, vector<1x8x128xf32>,
    return
  }
  func.func @transform_0(%arg0: i32) -> (i32, i32) {
    %c0_i32 = arith.constant 0 : i32
    %c0_i32_0 = arith.constant 0 : i32
    return %arg0, %c0_i32 : i32, i32
  }
  func.func @transform_1(%arg0: i32) -> (i32, i32) {
    %c0_i32 = arith.constant 0 : i32
    %c0_i32_0 = arith.constant 0 : i32
    %c0_i32_1 = arith.constant 0 : i32
    return %c0_i32, %c0_i32_0 : i32, i32
  }
  func.func @transform_2(%arg0: i32) -> (i32, i32) {
    %c0_i32 = arith.constant 0 : i32
    %c0_i32_0 = arith.constant 0 : i32
    return %arg0, %c0_i32 : i32, i32
  }
  func.func @transform_3(%arg0: i32) -> (i32, i32, i32) {
    %c0_i32 = arith.constant 0 : i32
    %c0_i32_0 = arith.constant 0 : i32
    %c0_i32_1 = arith.constant 0 : i32
    return %arg0, %c0_i32, %c0_i32_0 : i32, i32, i32
  }
}

module attributes {stable_mosaic.version = 11 : i64} {
  func.func @h2gcn_conv_kernel_1k(%arg0: i32, %arg1: memref<128x128xbf16, #tpu.memory_space<vmem>>, %arg2: memref<128x128xbf16, #tpu.memory_space<vmem>>, %arg3: memref<128x128xbf16, #tpu.memory_space<vmem>>, %arg4: memref<1x8x128xf32, #tpu.memory_space<vmem>>) attributes {dimension_semantics = [#tpu.dimension_semantics<parallel>], iteration_bounds = array<i64: 2>, scalar_prefetch = 0 : i64, scratch_operands = 0 : i64, tpu.core_type = #tpu.core_type<tc>, window_params = [{transform_indices = @transform_0, window_bounds = array<i64: 128, 128>}, {pipeline_mode = #tpu.pipeline_mode<synchronous>, transform_indices = @transform_1, window_bounds = array<i64: 128, 128>}, {transform_indices = @transform_2, window_bounds = array<i64: 128, 128>}, {transform_indices = @transform_3, window_bounds = array<i64: 1, 8, 128>}]} {
    %c0 = arith.constant 0 : index
    %c0_0 = arith.constant 0 : index
    %0 = vector.load %arg1[%c0, %c0_0] : memref<128x128xbf16, #tpu.memory_space<vmem>>, vector<128x128xbf16>
    %c0_1 = arith.constant 0 : index
    %c0_2 = arith.constant 0 : index
    %1 = vector.load %arg2[%c0_1, %c0_2] : memref<128x128xbf16, #tpu.memory_space<vmem>>, vector<128x128xbf16>
    %cst = arith.constant dense<0.000000e+00> : vector<128x128xf32>
    %2 = tpu.matmul %0, %1, %cst {dimension_numbers = #tpu.dot_dimension_numbers<[1], [0], [0], [1], [0, 0, 1, 1], [], []>} : vector<128x128xbf16>, vector<128x128xbf16>, vector<128x128xf32> -> vector<128x128xf32>
    %3 = arith.truncf %2 : vector<128x128xf32> to vector<128x128xbf16>
    %c0_3 = arith.constant 0 : index
    %c0_4 = arith.constant 0 : index
    %4 = vector.load %arg3[%c0_3, %c0_4] : memref<128x128xbf16, #tpu.memory_space<vmem>>, vector<128x128xbf16>
    tpu.vector_store %arg3[%c0_3, %c0_4], %3 {strides = array<i32>} : memref<128x128xbf16, #tpu.memory_space<vmem>>, vector<128x128xbf16>,
    %5 = arith.extf %3 : vector<128x128xbf16> to vector<128x128xf32>
    %cst_5 = arith.constant dense<0.000000e+00> : vector<128xf32>
    %6 = vector.multi_reduction <add>, %5, %cst_5 [0] : vector<128x128xf32> to vector<128xf32>
    %7 = vector.shape_cast %6 : vector<128xf32> to vector<1x128xf32>
    %8 = arith.mulf %5, %5 : vector<128x128xf32>
    %cst_6 = arith.constant dense<0.000000e+00> : vector<128xf32>
    %9 = vector.multi_reduction <add>, %8, %cst_6 [0] : vector<128x128xf32> to vector<128xf32>
    %10 = vector.shape_cast %9 : vector<128xf32> to vector<1x128xf32>
    %cst_7 = arith.constant 0.000000e+00 : f32
    %11 = vector.broadcast %cst_7 : f32 to vector<6x128xf32>
    %12 = tpu.concatenate %7, %10, %11 in 0 : vector<1x128xf32>, vector<1x128xf32>, vector<6x128xf32> -> vector<8x128xf32>
    %c0_8 = arith.constant 0 : index
    %c0_9 = arith.constant 0 : index
    %c0_10 = arith.constant 0 : index
    %13 = vector.load %arg4[%c0_8, %c0_9, %c0_10] : memref<1x8x128xf32, #tpu.memory_space<vmem>>, vector<1x8x128xf32>
    %14 = vector.shape_cast %13 : vector<1x8x128xf32> to vector<8x128xf32>
    %15 = vector.shape_cast %12 : vector<8x128xf32> to vector<1x8x128xf32>
    tpu.vector_store %arg4[%c0_8, %c0_9, %c0_10], %15 {strides = array<i32>} : memref<1x8x128xf32, #tpu.memory_space<vmem>>, vector<1x8x128xf32>,
    return
  }
  func.func @transform_0(%arg0: i32) -> (i32, i32) {
    %c0_i32 = arith.constant 0 : i32
    %c0_i32_0 = arith.constant 0 : i32
    return %arg0, %c0_i32 : i32, i32
  }
  func.func @transform_1(%arg0: i32) -> (i32, i32) {
    %c0_i32 = arith.constant 0 : i32
    %c0_i32_0 = arith.constant 0 : i32
    %c0_i32_1 = arith.constant 0 : i32
    return %c0_i32, %c0_i32_0 : i32, i32
  }
  func.func @transform_2(%arg0: i32) -> (i32, i32) {
    %c0_i32 = arith.constant 0 : i32
    %c0_i32_0 = arith.constant 0 : i32
    return %arg0, %c0_i32 : i32, i32
  }
  func.func @transform_3(%arg0: i32) -> (i32, i32, i32) {
    %c0_i32 = arith.constant 0 : i32
    %c0_i32_0 = arith.constant 0 : i32
    %c0_i32_1 = arith.constant 0 : i32
    return %arg0, %c0_i32, %c0_i32_0 : i32, i32, i32
  }
}

module attributes {stable_mosaic.version = 11 : i64} {
  func.func @linear_kernel(%arg0: i32, %arg1: memref<16x256xbf16, #tpu.memory_space<vmem>>, %arg2: memref<256x128xbf16, #tpu.memory_space<vmem>>, %arg3: memref<1x128xf32, #tpu.memory_space<vmem>>, %arg4: memref<16x128xf32, #tpu.memory_space<vmem>>) attributes {dimension_semantics = [#tpu.dimension_semantics<parallel>], iteration_bounds = array<i64: 1>, scalar_prefetch = 0 : i64, scratch_operands = 0 : i64, tpu.core_type = #tpu.core_type<tc>, window_params = [{transform_indices = @transform_0, window_bounds = array<i64: 16, 256>}, {pipeline_mode = #tpu.pipeline_mode<synchronous>, transform_indices = @transform_1, window_bounds = array<i64: 256, 128>}, {pipeline_mode = #tpu.pipeline_mode<synchronous>, transform_indices = @transform_2, window_bounds = array<i64: 1, 128>}, {transform_indices = @transform_3, window_bounds = array<i64: 16, 128>}]} {
    %c0 = arith.constant 0 : index
    %c0_0 = arith.constant 0 : index
    %0 = vector.load %arg1[%c0, %c0_0] : memref<16x256xbf16, #tpu.memory_space<vmem>>, vector<16x256xbf16>
    %c0_1 = arith.constant 0 : index
    %c0_2 = arith.constant 0 : index
    %1 = vector.load %arg2[%c0_1, %c0_2] : memref<256x128xbf16, #tpu.memory_space<vmem>>, vector<256x128xbf16>
    %cst = arith.constant dense<0.000000e+00> : vector<16x128xf32>
    %2 = tpu.matmul %0, %1, %cst {dimension_numbers = #tpu.dot_dimension_numbers<[1], [0], [0], [1], [0, 0, 1, 1], [], []>} : vector<16x256xbf16>, vector<256x128xbf16>, vector<16x128xf32> -> vector<16x128xf32>
    %c0_3 = arith.constant 0 : index
    %c0_4 = arith.constant 0 : index
    %3 = vector.load %arg3[%c0_3, %c0_4] : memref<1x128xf32, #tpu.memory_space<vmem>>, vector<1x128xf32>
    %4 = vector.broadcast %3 : vector<1x128xf32> to vector<16x128xf32>
    %5 = arith.addf %2, %4 : vector<16x128xf32>
    %c0_5 = arith.constant 0 : index
    %c0_6 = arith.constant 0 : index
    %6 = vector.load %arg4[%c0_5, %c0_6] : memref<16x128xf32, #tpu.memory_space<vmem>>, vector<16x128xf32>
    tpu.vector_store %arg4[%c0_5, %c0_6], %5 {strides = array<i32>} : memref<16x128xf32, #tpu.memory_space<vmem>>, vector<16x128xf32>,
    return
  }
  func.func @transform_0(%arg0: i32) -> (i32, i32) {
    %c0_i32 = arith.constant 0 : i32
    %c0_i32_0 = arith.constant 0 : i32
    return %arg0, %c0_i32 : i32, i32
  }
  func.func @transform_1(%arg0: i32) -> (i32, i32) {
    %c0_i32 = arith.constant 0 : i32
    %c0_i32_0 = arith.constant 0 : i32
    %c0_i32_1 = arith.constant 0 : i32
    return %c0_i32, %c0_i32_0 : i32, i32
  }
  func.func @transform_2(%arg0: i32) -> (i32, i32) {
    %c0_i32 = arith.constant 0 : i32
    %c0_i32_0 = arith.constant 0 : i32
    %c0_i32_1 = arith.constant 0 : i32
    return %c0_i32, %c0_i32_0 : i32, i32
  }
  func.func @transform_3(%arg0: i32) -> (i32, i32) {
    %c0_i32 = arith.constant 0 : i32
    %c0_i32_0 = arith.constant 0 : i32
    return %arg0, %c0_i32 : i32, i32
  }
}

</mosaic_0001>

<llo_original>
// kernel: h2gcn_forward.4
$region0: #{h2gcn_forward.4}
  #allocation0 [shape = 'u32[]', space=smem, size = 0x4, offset = 0x4, fixed_abs, tag = 'smem constant byte address 0x4 - core index']
  #allocation1 [shape = 'u32[144,128]{1,0:T(1,128)}', space=vmem, size = 0x12000, scoped, tag = 'internal scratch']
  %s0 = inlined_call_operand.vmem [shape: bf16[16,128], index: 0, kind: input, shape index: {}]
  %s1 = inlined_call_operand.vmem [shape: bf16[128,128], index: 1, kind: input, shape index: {}]
  %s2 = inlined_call_operand.vmem [shape: f32[1,128], index: 2, kind: input, shape index: {}]
  %s3 = inlined_call_operand.vmem [shape: bf16[16,128], index: 3, kind: output, shape index: {}]
  %s4 = sld [smem:[#allocation0]]
  $region22: #{h2gcn_forward.4} parent=0
    _
  %s6 = ssub.s32 1, %s4
  %s7 = scalar_select 0, %s6, %s4
  // Predicated region
  $region2: #{h2gcn_forward.4} parent=0 // pred_check
    _
  $region3: #{h2gcn_forward.4} parent=0 // pred_check_branch
    %9 = sbr.rel (0) target = $region5
  $region4: #{h2gcn_forward.4} parent=0 // pred_region
    _
  $region5: #{h2gcn_forward.4} parent=0 // pred_fallthru
    _
  // Predicated region
  $region6: #{h2gcn_forward.4} parent=0 // pred_check
    _
  $region7: #{h2gcn_forward.4} parent=0 // pred_check_branch
    %11 = sbr.rel (0) target = $region9
  $region8: #{h2gcn_forward.4} parent=0 // pred_region
    _
  $region9: #{h2gcn_forward.4} parent=0 // pred_fallthru
    _
  // Predicated region
  $region10: #{h2gcn_forward.4} parent=0 // pred_check
    _
  $region11: #{h2gcn_forward.4} parent=0 // pred_check_branch
    %13 = sbr.rel (0) target = $region13
  $region12: #{h2gcn_forward.4} parent=0 // pred_region
    _
  $region13: #{h2gcn_forward.4} parent=0 // pred_fallthru
    _
  %v15 = vld [vmem:[%s0] sm:$0xf]
  %v16 = vld [vmem:[%s0 + $0x4] sm:$0xf]
  %v17 = vld [vmem:[%s1] sm:$0xf]
  %v18 = vld [vmem:[%s1 + $0x4] sm:$0xf]
  %v19 = vld [vmem:[%s1 + $0x8] sm:$0xf]
  %v20 = vld [vmem:[%s1 + $0xc] sm:$0xf]
  %v21 = vld [vmem:[%s1 + $0x10] sm:$0xf]
  %v22 = vld [vmem:[%s1 + $0x14] sm:$0xf]
  %v23 = vld [vmem:[%s1 + $0x18] sm:$0xf]
  %v24 = vld [vmem:[%s1 + $0x1c] sm:$0xf]
  %v25 = vld [vmem:[%s1 + $0x20] sm:$0xf]
  %v26 = vld [vmem:[%s1 + $0x24] sm:$0xf]
  %v27 = vld [vmem:[%s1 + $0x28] sm:$0xf]
  %v28 = vld [vmem:[%s1 + $0x2c] sm:$0xf]
  %v29 = vld [vmem:[%s1 + $0x30] sm:$0xf]
  %v30 = vld [vmem:[%s1 + $0x34] sm:$0xf]
  %v31 = vld [vmem:[%s1 + $0x38] sm:$0xf]
  %v32 = vld [vmem:[%s1 + $0x3c] sm:$0xf]
  %v33 = vld [vmem:[%s2] sm:$0x1]
  %v35 = vlaneseq
  %v36 = vshrl.u32 %v35, 7
  %v37 = vsub.s32 0, %v36
  %v38 = vrot.slane %v33, %v37
  %v42 = vunpack.c.l.b16 %v15
  %v43 = vunpack.c.l.b16 %v16
  %v44 = vpack.c.b16 %v43, %v42
  %v62 = vunpack.c.l.b16 %v17
  %v63 = vunpack.c.l.b16 %v18
  %v64 = vunpack.c.l.b16 %v19
  %v65 = vunpack.c.l.b16 %v20
  %v66 = vunpack.c.l.b16 %v21
  %v67 = vunpack.c.l.b16 %v22
  %v68 = vunpack.c.l.b16 %v23
  %v69 = vunpack.c.l.b16 %v24
  %v70 = vunpack.c.l.b16 %v25
  %v71 = vunpack.c.l.b16 %v26
  %v72 = vunpack.c.l.b16 %v27
  %v73 = vunpack.c.l.b16 %v28
  %v74 = vunpack.c.l.b16 %v29
  %v75 = vunpack.c.l.b16 %v30
  %v76 = vunpack.c.l.b16 %v31
  %v77 = vunpack.c.l.b16 %v32
  %v78 = vpack.c.b16 %v63, %v62
  %v79 = vpack.c.b16 %v65, %v64
  %v80 = vpack.c.b16 %v67, %v66
  %v81 = vpack.c.b16 %v69, %v68
  %v82 = vpack.c.b16 %v71, %v70
  %v83 = vpack.c.b16 %v73, %v72
  %v84 = vpack.c.b16 %v75, %v74
  %v85 = vpack.c.b16 %v77, %v76
  %94 = vmatprep.subr.bf16.mxu0 0
  %95 = vmatpush1.bf16.msra.mxu0 %v85
  %96 = vmatprep.subr.bf16.mxu0 0
  %97 = vmatpush1.bf16.msra.mxu0 %v84
  %98 = vmatprep.subr.bf16.mxu0 0
  %99 = vmatpush1.bf16.msra.mxu0 %v83
  %100 = vmatprep.subr.bf16.mxu0 0
  %101 = vmatpush1.bf16.msra.mxu0 %v82
  %102 = vmatprep.subr.bf16.mxu0 0
  %103 = vmatpush1.bf16.msra.mxu0 %v81
  %104 = vmatprep.subr.bf16.mxu0 0
  %105 = vmatpush1.bf16.msra.mxu0 %v80
  %106 = vmatprep.subr.bf16.mxu0 0
  %107 = vmatpush1.bf16.msra.mxu0 %v79
  %108 = vmatprep.subr.bf16.mxu0 0
  %109 = vmatpush1.bf16.msra.mxu0 %v78
  %110 = vmatprep.subr.bf16.mxu0 0
  %111 = vmatpush2.bf16.msra.mxu0 0
  %112 = vmatprep.subr.bf16.mxu0 0
  %113 = vmatpush2.bf16.msra.mxu0 0
  %114 = vmatprep.subr.bf16.mxu0 0
  %115 = vmatpush2.bf16.msra.mxu0 0
  %116 = vmatprep.subr.bf16.mxu0 0
  %117 = vmatpush2.bf16.msra.mxu0 0
  %118 = vmatprep.subr.bf16.mxu0 0
  %119 = vmatpush2.bf16.msra.mxu0 0
  %120 = vmatprep.subr.bf16.mxu0 0
  %121 = vmatpush2.bf16.msra.mxu0 0
  %122 = vmatprep.subr.bf16.mxu0 0
  %123 = vmatpush2.bf16.msra.mxu0 0
  %124 = vmatprep.subr.bf16.mxu0 0
  %125 = vmatpush2.bf16.msra.mxu0 0
  %126 = vmatprep.mubr.bf16.mxu0 0
  %127 = vmatmul.mubr.bf16.gmra.mxu0 %v44
  %v128 = vpop.f32.mrf.mxu0
  %v129 = vadd.f32 %v38, %v128
  %v130 = vpop.f32.mrf.mxu0
  %v131 = vpop.f32.mrf.mxu0
  %v132 = vadd.f32 %v38, %v131
  %v133 = vpop.f32.mrf.mxu0
  %134 = vdwg.mxu0
  %v135 = vmax.f32 %v129, 0.0
  %v136 = vmax.f32 %v132, 0.0
  %v137 = vpack.c.bf16 %v136, %v135
  %v139 = vunpack.c.l.b16 %v137
  %v140 = vunpack.c.h.b16 %v137
  %v141 = vpack.c.b16 %v139, %v139
  %v142 = vpack.c.b16 %v140, %v140
  %145 = vst [vmem:[%s3] sm:$0xf] %v141
  %146 = vst [vmem:[%s3 + $0x4] sm:$0xf] %v142
  // Predicated region
  $region14: #{h2gcn_forward.4} parent=0 // pred_check
    _
  $region15: #{h2gcn_forward.4} parent=0 // pred_check_branch
    %148 = sbr.rel (0) target = $region17
  $region16: #{h2gcn_forward.4} parent=0 // pred_region
    _
  $region17: #{h2gcn_forward.4} parent=0 // pred_fallthru
    _
  // Predicated region
  $region18: #{h2gcn_forward.4} parent=0 // pred_check
    _
  $region19: #{h2gcn_forward.4} parent=0 // pred_check_branch
    %150 = sbr.rel (0) target = $region21
  $region20: #{h2gcn_forward.4} parent=0 // pred_region
    _
  $region21: #{h2gcn_forward.4} parent=0 // pred_fallthru
    _

// kernel: h2gcn_forward.5
$region0: #{h2gcn_forward.5}
  #allocation0 [shape = 'u32[]', space=smem, size = 0x4, offset = 0x4, fixed_abs, tag = 'smem constant byte address 0x4 - core index']
  #allocation1 [shape = 'u32[144,128]{1,0:T(1,128)}', space=vmem, size = 0x12000, scoped, tag = 'internal scratch']
  %s0 = inlined_call_operand.vmem [shape: bf16[256,128], index: 0, kind: input, shape index: {}]
  %s1 = inlined_call_operand.vmem [shape: bf16[128,128], index: 1, kind: input, shape index: {}]
  %s2 = inlined_call_operand.vmem [shape: bf16[256,128], index: 2, kind: output, shape index: {0}]
  %s3 = inlined_call_operand.vmem [shape: f32[2,8,128], index: 3, kind: output, shape index: {1}]
  %4 = xla_tuple %s2, %s3
  %s5 = sld [smem:[#allocation0]]
  $region49: #{h2gcn_forward.5} parent=0
    _
  %s7 = ssub.s32 1, %s5
  %s8 = scalar_select 0, %s7, %s5
  loop: start=0, step=1, limit=4
  $region2: #{h2gcn_forward.5} parent=0 // loop_pre_header
    _
  $region3: #{h2gcn_forward.5} parent=0 // loop_header
    %s10 = sphi 0, %s14
    %p11 = scmp.ge.s32.totalorder %s10, 4
    %s20 = sphi 0, %s22
    %s23 = sphi 0, %s20
    %s24 = sphi 0, %s23
    %s40 = sphi 0, %s24
    %s44 = sphi 0, %s44
    %s46 = sphi 0, %s44
    %s47 = sphi 0, %s46
    %s61 = sphi 0, %s47
    %s67 = sphi 0, %s69
    %s70 = sphi 0, %s67
    %s71 = sphi 0, %s70
    %s87 = sphi 0, %s71
    %s93 = sphi 0, %s95
    %s96 = sphi 0, %s93
    %s97 = sphi 0, %s96
    %s113 = sphi 0, %s97
  $region4: #{h2gcn_forward.5} parent=0 // loop_header_branch
    %13 = sbr.rel (%p11) target = $region8
  $region5: #{h2gcn_forward.5} parent=0 // loop_body
    %s15 = ssub.s32 %s10, 1
    %s16 = ssub.s32 %s10, 2
    %s17 = sadd.s32 %s10, 1
    %s18 = ssub.s32 %s10, %s17
    %p19 = scmp.eq.s32.totalorder %s18, 0
    %s21 = sadd.s32 %s20, 1
    %s22 = scalar_select %p19, %s20, %s21
    %p25 = pneg %p19
    %p26 = scmp.eq.s32.totalorder %s10, 1
    %p27 = por %p25, %p26
    %p28 = scmp.ne.s32.totalorder %s20, %s23
    %p29 = scmp.eq.s32.totalorder %s10, 0
    %p30 = por %p28, %p29
    %p31 = scmp.ne.s32.totalorder %s20, %s23
    %p32 = scmp.eq.s32.totalorder %s15, 1
    %p33 = por %p31, %p32
    %p34 = scmp.ne.s32.totalorder %s23, %s24
    %p35 = scmp.eq.s32.totalorder %s15, 0
    %p36 = por %p34, %p35
    %p37 = scmp.ne.s32.totalorder %s23, %s24
    %p38 = scmp.eq.s32.totalorder %s16, 1
    %p39 = por %p37, %p38
    %p41 = scmp.ne.s32.totalorder %s24, %s40
    %p42 = scmp.eq.s32.totalorder %s16, 0
    %p43 = por %p41, %p42
    %s45 = sadd.s32 %s44, 1
    %p48 = scmp.eq.s32.totalorder %s10, 1
    %p49 = scmp.ne.s32.totalorder %s44, %s46
    %p50 = scmp.eq.s32.totalorder %s10, 0
    %p51 = por %p49, %p50
    %p52 = scmp.ne.s32.totalorder %s44, %s46
    %p53 = scmp.eq.s32.totalorder %s15, 1
    %p54 = por %p52, %p53
    %p55 = scmp.ne.s32.totalorder %s46, %s47
    %p56 = scmp.eq.s32.totalorder %s15, 0
    %p57 = por %p55, %p56
    %p58 = scmp.ne.s32.totalorder %s46, %s47
    %p59 = scmp.eq.s32.totalorder %s16, 1
    %p60 = por %p58, %p59
    %p62 = scmp.ne.s32.totalorder %s47, %s61
    %p63 = scmp.eq.s32.totalorder %s16, 0
    %p64 = por %p62, %p63
    %s65 = ssub.s32 %s10, %s17
    %p66 = scmp.eq.s32.totalorder %s65, 0
    %s68 = sadd.s32 %s67, 1
    %s69 = scalar_select %p66, %s67, %s68
    %p72 = pneg %p66
    %p73 = scmp.eq.s32.totalorder %s10, 1
    %p74 = por %p72, %p73
    %p75 = scmp.ne.s32.totalorder %s67, %s70
    %p76 = scmp.eq.s32.totalorder %s10, 0
    %p77 = por %p75, %p76
    %p78 = scmp.ne.s32.totalorder %s67, %s70
    %p79 = scmp.eq.s32.totalorder %s15, 1
    %p80 = por %p78, %p79
    %p81 = scmp.ne.s32.totalorder %s70, %s71
    %p82 = scmp.eq.s32.totalorder %s15, 0
    %p83 = por %p81, %p82
    %p84 = scmp.ne.s32.totalorder %s70, %s71
    %p85 = scmp.eq.s32.totalorder %s16, 1
    %p86 = por %p84, %p85
    %p88 = scmp.ne.s32.totalorder %s71, %s87
    %p89 = scmp.eq.s32.totalorder %s16, 0
    %p90 = por %p88, %p89
    %s91 = ssub.s32 %s10, %s17
    %p92 = scmp.eq.s32.totalorder %s91, 0
    %s94 = sadd.s32 %s93, 1
    %s95 = scalar_select %p92, %s93, %s94
    %p98 = pneg %p92
    %p99 = scmp.eq.s32.totalorder %s10, 1
    %p100 = por %p98, %p99
    %p101 = scmp.ne.s32.totalorder %s93, %s96
    %p102 = scmp.eq.s32.totalorder %s10, 0
    %p103 = por %p101, %p102
    %p104 = scmp.ne.s32.totalorder %s93, %s96
    %p105 = scmp.eq.s32.totalorder %s15, 1
    %p106 = por %p104, %p105
    %p107 = scmp.ne.s32.totalorder %s96, %s97
    %p108 = scmp.eq.s32.totalorder %s15, 0
    %p109 = por %p107, %p108
    %p110 = scmp.ne.s32.totalorder %s96, %s97
    %p111 = scmp.eq.s32.totalorder %s16, 1
    %p112 = por %p110, %p111
    %p114 = scmp.ne.s32.totalorder %s97, %s113
    %p115 = scmp.eq.s32.totalorder %s16, 0
    %p116 = por %p114, %p115
    %p117 = scmp.le.s32.totalorder 1, %s10
    %p118 = scmp.lt.s32.totalorder %s10, 3
    %p119 = pnand %p117, %p118
    %p120 = pneg %p119
    // Predicated region
    $region9: #{h2gcn_forward.5} parent=5 // pred_check
      _
    $region10: #{h2gcn_forward.5} parent=5 // pred_check_branch
      %122 = sbr.rel (%p119) target = $region12
    $region11: #{h2gcn_forward.5} parent=5 // pred_region
      %s123 = ssub.s32 %s10, 1
      // Predicated region
      $region13: #{h2gcn_forward.5} parent=11 // pred_check
        %p124 = pneg %p57
      $region14: #{h2gcn_forward.5} parent=11 // pred_check_branch
        %126 = sbr.rel (%p124) target = $region16
      $region15: #{h2gcn_forward.5} parent=11 // pred_region
        _
      $region16: #{h2gcn_forward.5} parent=11 // pred_fallthru
        _
    $region12: #{h2gcn_forward.5} parent=5 // pred_fallthru
      _
    %p127 = scmp.lt.s32.totalorder %s10, 2
    // Predicated region
    $region17: #{h2gcn_forward.5} parent=5 // pred_check
      %p128 = pneg %p127
    $region18: #{h2gcn_forward.5} parent=5 // pred_check_branch
      %130 = sbr.rel (%p128) target = $region20
    $region19: #{h2gcn_forward.5} parent=5 // pred_region
      // Predicated region
      $region21: #{h2gcn_forward.5} parent=19 // pred_check
        %p131 = pneg %p30
      $region22: #{h2gcn_forward.5} parent=19 // pred_check_branch
        %133 = sbr.rel (%p131) target = $region24
      $region23: #{h2gcn_forward.5} parent=19 // pred_region
        %s134 = smul.u32 16, %s10
        %p135 = scmp.lt.s32.totalorder %s134, 31
        %s136 = scalar_select %p135, %s134, 31
        %s137 = smul.addr %s136, 4
        %s138 = scalar_lea.vmem %s0, %s137
        %s139 = smul.u32 16, %s10
      $region24: #{h2gcn_forward.5} parent=19 // pred_fallthru
        _
    $region20: #{h2gcn_forward.5} parent=5 // pred_fallthru
      _
    %p140 = scmp.le.s32.totalorder 1, %s10
    %p141 = scmp.lt.s32.totalorder %s10, 3
    %p142 = pnand %p140, %p141
    %p143 = pneg %p142
    // Predicated region
    $region25: #{h2gcn_forward.5} parent=5 // pred_check
      _
    $region26: #{h2gcn_forward.5} parent=5 // pred_check_branch
      %145 = sbr.rel (%p142) target = $region28
    $region27: #{h2gcn_forward.5} parent=5 // pred_region
      %s146 = ssub.s32 %s10, 1
      %s147 = smul.u32 16, %s15
      %p148 = scmp.lt.s32.totalorder %s147, 31
      %s149 = scalar_select %p148, %s147, 31
      %s150 = smul.addr %s149, 4
      %s151 = scalar_lea.vmem %s0, %s150
      %p152 = pneg %p36
      %p153 = pneg %p33
      %p154 = pneg %p57
      %p155 = pneg %p54
      %p156 = pneg %p83
      %p157 = pneg %p80
      %s158 = smul.u32 16, %s15
      %p159 = scmp.lt.s32.totalorder %s158, 31
      %s160 = scalar_select %p159, %s158, 31
      %s161 = smul.addr %s160, 4
      %s162 = scalar_lea.vmem %s2, %s161
      %p163 = pneg %p109
      %p164 = pneg %p106
      %p165 = scmp.lt.s32.totalorder %s15, 1
      %s166 = scalar_select %p165, %s15, 1
      %s167 = smul.addr %s166, 8
      %s168 = scalar_lea.vmem %s3, %s167
      %s169 = smul.u32 16, %s15
      %p170 = scmp.lt.s32.totalorder %s169, 31
      %s171 = scalar_select %p170, %s169, 31
      %s172 = smul.addr %s171, 4
      %s173 = scalar_lea.vmem %s0, %s172
      %s174 = smul.u32 16, %s15
      %s175 = smul.u32 16, %s15
      %p176 = scmp.lt.s32.totalorder %s175, 31
      %s177 = scalar_select %p176, %s175, 31
      %s178 = smul.addr %s177, 4
      %s179 = scalar_lea.vmem %s2, %s178
      %s180 = smul.u32 16, %s15
      %p181 = scmp.lt.s32.totalorder %s15, 1
      %s182 = scalar_select %p181, %s15, 1
      %s183 = smul.addr %s182, 8
      %s184 = scalar_lea.vmem %s3, %s183
      %v186 = vld [vmem:[%s173] sm:$0xf]
      %v187 = vld [vmem:[%s173 + $0x4] sm:$0xf]
      %v188 = vld [vmem:[%s173 + $0x8] sm:$0xf]
      %v189 = vld [vmem:[%s173 + $0xc] sm:$0xf]
      %v190 = vld [vmem:[%s173 + $0x10] sm:$0xf]
      %v191 = vld [vmem:[%s173 + $0x14] sm:$0xf]
      %v192 = vld [vmem:[%s173 + $0x18] sm:$0xf]
      %v193 = vld [vmem:[%s173 + $0x1c] sm:$0xf]
      %v194 = vld [vmem:[%s173 + $0x20] sm:$0xf]
      %v195 = vld [vmem:[%s173 + $0x24] sm:$0xf]
      %v196 = vld [vmem:[%s173 + $0x28] sm:$0xf]
      %v197 = vld [vmem:[%s173 + $0x2c] sm:$0xf]
      %v198 = vld [vmem:[%s173 + $0x30] sm:$0xf]
      %v199 = vld [vmem:[%s173 + $0x34] sm:$0xf]
      %v200 = vld [vmem:[%s173 + $0x38] sm:$0xf]
      %v201 = vld [vmem:[%s173 + $0x3c] sm:$0xf]
      %v202 = vld [vmem:[%s1] sm:$0xf]
      %v203 = vld [vmem:[%s1 + $0x4] sm:$0xf]
      %v204 = vld [vmem:[%s1 + $0x8] sm:$0xf]
      %v205 = vld [vmem:[%s1 + $0xc] sm:$0xf]
      %v206 = vld [vmem:[%s1 + $0x10] sm:$0xf]
      %v207 = vld [vmem:[%s1 + $0x14] sm:$0xf]
      %v208 = vld [vmem:[%s1 + $0x18] sm:$0xf]
      %v209 = vld [vmem:[%s1 + $0x1c] sm:$0xf]
      %v210 = vld [vmem:[%s1 + $0x20] sm:$0xf]
      %v211 = vld [vmem:[%s1 + $0x24] sm:$0xf]
      %v212 = vld [vmem:[%s1 + $0x28] sm:$0xf]
      %v213 = vld [vmem:[%s1 + $0x2c] sm:$0xf]
      %v214 = vld [vmem:[%s1 + $0x30] sm:$0xf]
      %v215 = vld [vmem:[%s1 + $0x34] sm:$0xf]
      %v216 = vld [vmem:[%s1 + $0x38] sm:$0xf]
      %v217 = vld [vmem:[%s1 + $0x3c] sm:$0xf]
      %v234 = vunpack.c.l.b16 %v186
      %v235 = vunpack.c.l.b16 %v187
      %v236 = vunpack.c.l.b16 %v188
      %v237 = vunpack.c.l.b16 %v189
      %v238 = vunpack.c.l.b16 %v190
      %v239 = vunpack.c.l.b16 %v191
      %v240 = vunpack.c.l.b16 %v192
      %v241 = vunpack.c.l.b16 %v193
      %v242 = vunpack.c.l.b16 %v194
      %v243 = vunpack.c.l.b16 %v195
      %v244 = vunpack.c.l.b16 %v196
      %v245 = vunpack.c.l.b16 %v197
      %v246 = vunpack.c.l.b16 %v198
      %v247 = vunpack.c.l.b16 %v199
      %v248 = vunpack.c.l.b16 %v200
      %v249 = vunpack.c.l.b16 %v201
      %v250 = vpack.c.b16 %v235, %v234
      %v251 = vpack.c.b16 %v237, %v236
      %v252 = vpack.c.b16 %v239, %v238
      %v253 = vpack.c.b16 %v241, %v240
      %v254 = vpack.c.b16 %v243, %v242
      %v255 = vpack.c.b16 %v245, %v244
      %v256 = vpack.c.b16 %v247, %v246
      %v257 = vpack.c.b16 %v249, %v248
      %v282 = vunpack.c.l.b16 %v202
      %v283 = vunpack.c.l.b16 %v203
      %v284 = vunpack.c.l.b16 %v204
      %v285 = vunpack.c.l.b16 %v205
      %v286 = vunpack.c.l.b16 %v206
      %v287 = vunpack.c.l.b16 %v207
      %v288 = vunpack.c.l.b16 %v208
      %v289 = vunpack.c.l.b16 %v209
      %v290 = vunpack.c.l.b16 %v210
      %v291 = vunpack.c.l.b16 %v211
      %v292 = vunpack.c.l.b16 %v212
      %v293 = vunpack.c.l.b16 %v213
      %v294 = vunpack.c.l.b16 %v214
      %v295 = vunpack.c.l.b16 %v215
      %v296 = vunpack.c.l.b16 %v216
      %v297 = vunpack.c.l.b16 %v217
      %v298 = vpack.c.b16 %v283, %v282
      %v299 = vpack.c.b16 %v285, %v284
      %v300 = vpack.c.b16 %v287, %v286
      %v301 = vpack.c.b16 %v289, %v288
      %v302 = vpack.c.b16 %v291, %v290
      %v303 = vpack.c.b16 %v293, %v292
      %v304 = vpack.c.b16 %v295, %v294
      %v305 = vpack.c.b16 %v297, %v296
      %314 = vmatprep.subr.bf16.mxu0 0
      %315 = vmatpush1.bf16.msra.mxu0 %v305
      %316 = vmatprep.subr.bf16.mxu0 0
      %317 = vmatpush1.bf16.msra.mxu0 %v304
      %318 = vmatprep.subr.bf16.mxu0 0
      %319 = vmatpush1.bf16.msra.mxu0 %v303
      %320 = vmatprep.subr.bf16.mxu0 0
      %321 = vmatpush1.bf16.msra.mxu0 %v302
      %322 = vmatprep.subr.bf16.mxu0 0
      %323 = vmatpush1.bf16.msra.mxu0 %v301
      %324 = vmatprep.subr.bf16.mxu0 0
      %325 = vmatpush1.bf16.msra.mxu0 %v300
      %326 = vmatprep.subr.bf16.mxu0 0
      %327 = vmatpush1.bf16.msra.mxu0 %v299
      %328 = vmatprep.subr.bf16.mxu0 0
      %329 = vmatpush1.bf16.msra.mxu0 %v298
      %330 = vmatprep.subr.bf16.mxu0 0
      %331 = vmatpush2.bf16.msra.mxu0 0
      %332 = vmatprep.subr.bf16.mxu0 0
      %333 = vmatpush2.bf16.msra.mxu0 0
      %334 = vmatprep.subr.bf16.mxu0 0
      %335 = vmatpush2.bf16.msra.mxu0 0
      %336 = vmatprep.subr.bf16.mxu0 0
      %337 = vmatpush2.bf16.msra.mxu0 0
      %338 = vmatprep.subr.bf16.mxu0 0
      %339 = vmatpush2.bf16.msra.mxu0 0
      %340 = vmatprep.subr.bf16.mxu0 0
      %341 = vmatpush2.bf16.msra.mxu0 0
      %342 = vmatprep.subr.bf16.mxu0 0
      %343 = vmatpush2.bf16.msra.mxu0 0
      %344 = vmatprep.subr.bf16.mxu0 0
      %345 = vmatpush2.bf16.msra.mxu0 0
      %346 = vmatprep.mubr.bf16.mxu0 0
      %347 = vmatmul.mubr.bf16.gmra.mxu0 %v250
      %v348 = vpop.f32.mrf.mxu0
      %v349 = vadd.f32 0.0, %v348
      %v350 = vpop.f32.mrf.mxu0
      %v351 = vpop.f32.mrf.mxu0
      %v352 = vadd.f32 0.0, %v351
      %v353 = vpop.f32.mrf.mxu0
      %354 = vmatprep.mubr.bf16.mxu0 0
      %355 = vmatmul.mubr.bf16.gmra.mxu0 %v251
      %v356 = vpop.f32.mrf.mxu0
      %v357 = vadd.f32 0.0, %v356
      %v358 = vpop.f32.mrf.mxu0
      %v359 = vpop.f32.mrf.mxu0
      %v360 = vadd.f32 0.0, %v359
      %v361 = vpop.f32.mrf.mxu0
      %362 = vmatprep.mubr.bf16.mxu0 0
      %363 = vmatmul.mubr.bf16.gmra.mxu0 %v252
      %v364 = vpop.f32.mrf.mxu0
      %v365 = vadd.f32 0.0, %v364
      %v366 = vpop.f32.mrf.mxu0
      %v367 = vpop.f32.mrf.mxu0
      %v368 = vadd.f32 0.0, %v367
      %v369 = vpop.f32.mrf.mxu0
      %370 = vmatprep.mubr.bf16.mxu0 0
      %371 = vmatmul.mubr.bf16.gmra.mxu0 %v253
      %v372 = vpop.f32.mrf.mxu0
      %v373 = vadd.f32 0.0, %v372
      %v374 = vpop.f32.mrf.mxu0
      %v375 = vpop.f32.mrf.mxu0
      %v376 = vadd.f32 0.0, %v375
      %v377 = vpop.f32.mrf.mxu0
      %378 = vmatprep.mubr.bf16.mxu0 0
      %379 = vmatmul.mubr.bf16.gmra.mxu0 %v254
      %v380 = vpop.f32.mrf.mxu0
      %v381 = vadd.f32 0.0, %v380
      %v382 = vpop.f32.mrf.mxu0
      %v383 = vpop.f32.mrf.mxu0
      %v384 = vadd.f32 0.0, %v383
      %v385 = vpop.f32.mrf.mxu0
      %386 = vmatprep.mubr.bf16.mxu0 0
      %387 = vmatmul.mubr.bf16.gmra.mxu0 %v255
      %v388 = vpop.f32.mrf.mxu0
      %v389 = vadd.f32 0.0, %v388
      %v390 = vpop.f32.mrf.mxu0
      %v391 = vpop.f32.mrf.mxu0
      %v392 = vadd.f32 0.0, %v391
      %v393 = vpop.f32.mrf.mxu0
      %394 = vmatprep.mubr.bf16.mxu0 0
      %395 = vmatmul.mubr.bf16.gmra.mxu0 %v256
      %v396 = vpop.f32.mrf.mxu0
      %v397 = vadd.f32 0.0, %v396
      %v398 = vpop.f32.mrf.mxu0
      %v399 = vpop.f32.mrf.mxu0
      %v400 = vadd.f32 0.0, %v399
      %v401 = vpop.f32.mrf.mxu0
      %402 = vmatprep.mubr.bf16.mxu0 0
      %403 = vmatmul.mubr.bf16.gmra.mxu0 %v257
      %v404 = vpop.f32.mrf.mxu0
      %v405 = vadd.f32 0.0, %v404
      %v406 = vpop.f32.mrf.mxu0
      %v407 = vpop.f32.mrf.mxu0
      %v408 = vadd.f32 0.0, %v407
      %v409 = vpop.f32.mrf.mxu0
      %410 = vdwg.mxu0
      %v411 = vpack.c.bf16 %v352, %v349
      %v412 = vpack.c.bf16 %v360, %v357
      %v413 = vpack.c.bf16 %v368, %v365
      %v414 = vpack.c.bf16 %v376, %v373
      %v415 = vpack.c.bf16 %v384, %v381
      %v416 = vpack.c.bf16 %v392, %v389
      %v417 = vpack.c.bf16 %v400, %v397
      %v418 = vpack.c.bf16 %v408, %v405
      %v427 = vunpack.c.l.b16 %v411
      %v428 = vunpack.c.h.b16 %v411
      %v429 = vunpack.c.l.b16 %v412
      %v430 = vunpack.c.h.b16 %v412
      %v431 = vunpack.c.l.b16 %v413
      %v432 = vunpack.c.h.b16 %v413
      %v433 = vunpack.c.l.b16 %v414
      %v434 = vunpack.c.h.b16 %v414
      %v435 = vunpack.c.l.b16 %v415
      %v436 = vunpack.c.h.b16 %v415
      %v437 = vunpack.c.l.b16 %v416
      %v438 = vunpack.c.h.b16 %v416
      %v439 = vunpack.c.l.b16 %v417
      %v440 = vunpack.c.h.b16 %v417
      %v441 = vunpack.c.l.b16 %v418
      %v442 = vunpack.c.h.b16 %v418
      %v443 = vpack.c.b16 %v427, %v427
      %v444 = vpack.c.b16 %v428, %v428
      %v445 = vpack.c.b16 %v429, %v429
      %v446 = vpack.c.b16 %v430, %v430
      %v447 = vpack.c.b16 %v431, %v431
      %v448 = vpack.c.b16 %v432, %v432
      %v449 = vpack.c.b16 %v433, %v433
      %v450 = vpack.c.b16 %v434, %v434
      %v451 = vpack.c.b16 %v435, %v435
      %v452 = vpack.c.b16 %v436, %v436
      %v453 = vpack.c.b16 %v437, %v437
      %v454 = vpack.c.b16 %v438, %v438
      %v455 = vpack.c.b16 %v439, %v439
      %v456 = vpack.c.b16 %v440, %v440
      %v457 = vpack.c.b16 %v441, %v441
      %v458 = vpack.c.b16 %v442, %v442
      %475 = vst [vmem:[%s179] sm:$0xf] %v443
      %476 = vst [vmem:[%s179 + $0x4] sm:$0xf] %v444
      %477 = vst [vmem:[%s179 + $0x8] sm:$0xf] %v445
      %478 = vst [vmem:[%s179 + $0xc] sm:$0xf] %v446
      %479 = vst [vmem:[%s179 + $0x10] sm:$0xf] %v447
      %480 = vst [vmem:[%s179 + $0x14] sm:$0xf] %v448
      %481 = vst [vmem:[%s179 + $0x18] sm:$0xf] %v449
      %482 = vst [vmem:[%s179 + $0x1c] sm:$0xf] %v450
      %483 = vst [vmem:[%s179 + $0x20] sm:$0xf] %v451
      %484 = vst [vmem:[%s179 + $0x24] sm:$0xf] %v452
      %485 = vst [vmem:[%s179 + $0x28] sm:$0xf] %v453
      %486 = vst [vmem:[%s179 + $0x2c] sm:$0xf] %v454
      %487 = vst [vmem:[%s179 + $0x30] sm:$0xf] %v455
      %488 = vst [vmem:[%s179 + $0x34] sm:$0xf] %v456
      %489 = vst [vmem:[%s179 + $0x38] sm:$0xf] %v457
      %490 = vst [vmem:[%s179 + $0x3c] sm:$0xf] %v458
      %v491 = vunpack.c.l.bf16 %v411
      %v492 = vunpack.c.h.bf16 %v411
      %v493 = vunpack.c.l.bf16 %v412
      %v494 = vunpack.c.h.bf16 %v412
      %v495 = vunpack.c.l.bf16 %v413
      %v496 = vunpack.c.h.bf16 %v413
      %v497 = vunpack.c.l.bf16 %v414
      %v498 = vunpack.c.h.bf16 %v414
      %v499 = vunpack.c.l.bf16 %v415
      %v500 = vunpack.c.h.bf16 %v415
      %v501 = vunpack.c.l.bf16 %v416
      %v502 = vunpack.c.h.bf16 %v416
      %v503 = vunpack.c.l.bf16 %v417
      %v504 = vunpack.c.h.bf16 %v417
      %v505 = vunpack.c.l.bf16 %v418
      %v506 = vunpack.c.h.bf16 %v418
      %v507 = vadd.f32 %v491, %v492
      %v508 = vadd.f32 %v507, %v493
      %v509 = vadd.f32 %v508, %v494
      %v510 = vadd.f32 %v509, %v495
      %v511 = vadd.f32 %v510, %v496
      %v512 = vadd.f32 %v511, %v497
      %v513 = vadd.f32 %v512, %v498
      %v514 = vadd.f32 %v513, %v499
      %v515 = vadd.f32 %v514, %v500
      %v516 = vadd.f32 %v515, %v501
      %v517 = vadd.f32 %v516, %v502
      %v518 = vadd.f32 %v517, %v503
      %v519 = vadd.f32 %v518, %v504
      %v520 = vadd.f32 %v519, %v505
      %v521 = vadd.f32 %v520, %v506
      %v522 = vrot.slane %v521, 4
      %v523 = vadd.f32 %v521, %v522
      %v524 = vrot.slane %v523, 2
      %v525 = vadd.f32 %v523, %v524
      %v526 = vrot.slane %v525, 1
      %v527 = vadd.f32 %v525, %v526
      %v528 = vmul.f32 %v491, %v491
      %v529 = vmul.f32 %v492, %v492
      %v530 = vmul.f32 %v493, %v493
      %v531 = vmul.f32 %v494, %v494
      %v532 = vmul.f32 %v495, %v495
      %v533 = vmul.f32 %v496, %v496
      %v534 = vmul.f32 %v497, %v497
      %v535 = vmul.f32 %v498, %v498
      %v536 = vmul.f32 %v499, %v499
      %v537 = vmul.f32 %v500, %v500
      %v538 = vmul.f32 %v501, %v501
      %v539 = vmul.f32 %v502, %v502
      %v540 = vmul.f32 %v503, %v503
      %v541 = vmul.f32 %v504, %v504
      %v542 = vmul.f32 %v505, %v505
      %v543 = vmul.f32 %v506, %v506
      %v544 = vadd.f32 %v528, %v529
      %v545 = vadd.f32 %v544, %v530
      %v546 = vadd.f32 %v545, %v531
      %v547 = vadd.f32 %v546, %v532
      %v548 = vadd.f32 %v547, %v533
      %v549 = vadd.f32 %v548, %v534
      %v550 = vadd.f32 %v549, %v535
      %v551 = vadd.f32 %v550, %v536
      %v552 = vadd.f32 %v551, %v537
      %v553 = vadd.f32 %v552, %v538
      %v554 = vadd.f32 %v553, %v539
      %v555 = vadd.f32 %v554, %v540
      %v556 = vadd.f32 %v555, %v541
      %v557 = vadd.f32 %v556, %v542
      %v558 = vadd.f32 %v557, %v543
      %v559 = vrot.slane %v558, 4
      %v560 = vadd.f32 %v558, %v559
      %v561 = vrot.slane %v560, 2
      %v562 = vadd.f32 %v560, %v561
      %v563 = vrot.slane %v562, 1
      %v564 = vadd.f32 %v562, %v563
      %vm565 = vcmask 1040384
      %v566 = vsel %vm565, %v527, %v564
      %vm567 = vcmask 1041408
      %v568 = vsel %vm567, %v566, 0.0
      %569 = vst [vmem:[%s184] sm:$0xff] %v568
      %s570 = smul.u32 16, %s15
      %p571 = scmp.lt.s32.totalorder %s570, 31
      %s572 = scalar_select %p571, %s570, 31
      %s573 = smul.addr %s572, 4
      %s574 = scalar_lea.vmem %s2, %s573
      %p575 = scmp.lt.s32.totalorder %s15, 1
      %s576 = scalar_select %p575, %s15, 1
      %s577 = smul.addr %s576, 8
      %s578 = scalar_lea.vmem %s3, %s577
      // Predicated region
      $region29: #{h2gcn_forward.5} parent=27 // pred_check
        %p579 = pneg %p80
      $region30: #{h2gcn_forward.5} parent=27 // pred_check_branch
        %581 = sbr.rel (%p579) target = $region32
      $region31: #{h2gcn_forward.5} parent=27 // pred_region
        %s582 = smul.u32 16, %s15
      $region32: #{h2gcn_forward.5} parent=27 // pred_fallthru
        _
      // Predicated region
      $region33: #{h2gcn_forward.5} parent=27 // pred_check
        %p583 = pneg %p106
      $region34: #{h2gcn_forward.5} parent=27 // pred_check_branch
        %585 = sbr.rel (%p583) target = $region36
      $region35: #{h2gcn_forward.5} parent=27 // pred_region
        _
      $region36: #{h2gcn_forward.5} parent=27 // pred_fallthru
        _
    $region28: #{h2gcn_forward.5} parent=5 // pred_fallthru
      _
    %p586 = scmp.le.s32.totalorder 2, %s10
    // Predicated region
    $region37: #{h2gcn_forward.5} parent=5 // pred_check
      %p587 = pneg %p586
    $region38: #{h2gcn_forward.5} parent=5 // pred_check_branch
      %589 = sbr.rel (%p587) target = $region40
    $region39: #{h2gcn_forward.5} parent=5 // pred_region
      %s590 = ssub.s32 %s10, 2
      // Predicated region
      $region41: #{h2gcn_forward.5} parent=39 // pred_check
        %p591 = pneg %p86
      $region42: #{h2gcn_forward.5} parent=39 // pred_check_branch
        %593 = sbr.rel (%p591) target = $region44
      $region43: #{h2gcn_forward.5} parent=39 // pred_region
        %s594 = smul.u32 16, %s16
        %p595 = scmp.lt.s32.totalorder %s594, 31
        %s596 = scalar_select %p595, %s594, 31
        %s597 = smul.addr %s596, 4
        %s598 = scalar_lea.vmem %s2, %s597
      $region44: #{h2gcn_forward.5} parent=39 // pred_fallthru
        _
      // Predicated region
      $region45: #{h2gcn_forward.5} parent=39 // pred_check
        %p599 = pneg %p112
      $region46: #{h2gcn_forward.5} parent=39 // pred_check_branch
        %601 = sbr.rel (%p599) target = $region48
      $region47: #{h2gcn_forward.5} parent=39 // pred_region
        %p602 = scmp.lt.s32.totalorder %s16, 1
        %s603 = scalar_select %p602, %s16, 1
        %s604 = smul.addr %s603, 8
        %s605 = scalar_lea.vmem %s3, %s604
      $region48: #{h2gcn_forward.5} parent=39 // pred_fallthru
        _
    $region40: #{h2gcn_forward.5} parent=5 // pred_fallthru
      _
  $region6: #{h2gcn_forward.5} parent=0 // loop_footer
    %s14 = sadd.s32 1, %s10
  $region7: #{h2gcn_forward.5} parent=0 // loop_footer_branch
    %9 = sbr.rel target = $region3
  $region8: #{h2gcn_forward.5} parent=0 // loop_exit
    _

// kernel: h2gcn_forward.6
$region0: #{h2gcn_forward.6}
  #allocation0 [shape = 'u32[]', space=smem, size = 0x4, offset = 0x4, fixed_abs, tag = 'smem constant byte address 0x4 - core index']
  #allocation1 [shape = 'u32[144,128]{1,0:T(1,128)}', space=vmem, size = 0x12000, scoped, tag = 'internal scratch']
  %s0 = inlined_call_operand.vmem [shape: bf16[256,128], index: 0, kind: input, shape index: {}]
  %s1 = inlined_call_operand.vmem [shape: bf16[128,128], index: 1, kind: input, shape index: {}]
  %s2 = inlined_call_operand.vmem [shape: bf16[256,128], index: 2, kind: output, shape index: {0}]
  %s3 = inlined_call_operand.hbm [shape: f32[2,8,128], index: 3, kind: output, shape index: {1}]
  %4 = xla_tuple %s2, %s3
  %s5 = sld [smem:[#allocation0]]
  $region49: #{h2gcn_forward.6} parent=0
    _
  %s7 = ssub.s32 1, %s5
  %s8 = scalar_select 0, %s7, %s5
  $region1: #{h2gcn_forward.6} parent=0
    #allocation2 [shape = 'u8[8192]{0}', space=vmem, size = 0x2000, scoped, tag = 'output window, operand 1']
    #allocation3 [shape = 's32[2]{0}', space=sflag, size = 0x8, scoped, tag = 'scoped memory for h2gcn_forward.6']
    %9 = vsyncpa [#allocation3], 0
    %s10 = scalar_lea.sflag [#allocation3], 1
    %11 = vsyncpa %s10, 0
    loop: start=0, step=1, limit=4
    $region2: #{h2gcn_forward.6} parent=1 // loop_pre_header
      _
    $region3: #{h2gcn_forward.6} parent=1 // loop_header
      %s13 = sphi 0, %s17
      %p14 = scmp.ge.s32.totalorder %s13, 4
      %s23 = sphi 0, %s25
      %s26 = sphi 0, %s23
      %s27 = sphi 0, %s26
      %s43 = sphi 0, %s27
      %s47 = sphi 0, %s47
      %s49 = sphi 0, %s47
      %s50 = sphi 0, %s49
      %s64 = sphi 0, %s50
      %s70 = sphi 0, %s72
      %s73 = sphi 0, %s70
      %s74 = sphi 0, %s73
      %s90 = sphi 0, %s74
      %s96 = sphi 0, %s98
      %s99 = sphi 0, %s96
      %s100 = sphi 0, %s99
      %s116 = sphi 0, %s100
    $region4: #{h2gcn_forward.6} parent=1 // loop_header_branch
      %16 = sbr.rel (%p14) target = $region8
    $region5: #{h2gcn_forward.6} parent=1 // loop_body
      %s18 = ssub.s32 %s13, 1
      %s19 = ssub.s32 %s13, 2
      %s20 = sadd.s32 %s13, 1
      %s21 = ssub.s32 %s13, %s20
      %p22 = scmp.eq.s32.totalorder %s21, 0
      %s24 = sadd.s32 %s23, 1
      %s25 = scalar_select %p22, %s23, %s24
      %p28 = pneg %p22
      %p29 = scmp.eq.s32.totalorder %s13, 1
      %p30 = por %p28, %p29
      %p31 = scmp.ne.s32.totalorder %s23, %s26
      %p32 = scmp.eq.s32.totalorder %s13, 0
      %p33 = por %p31, %p32
      %p34 = scmp.ne.s32.totalorder %s23, %s26
      %p35 = scmp.eq.s32.totalorder %s18, 1
      %p36 = por %p34, %p35
      %p37 = scmp.ne.s32.totalorder %s26, %s27
      %p38 = scmp.eq.s32.totalorder %s18, 0
      %p39 = por %p37, %p38
      %p40 = scmp.ne.s32.totalorder %s26, %s27
      %p41 = scmp.eq.s32.totalorder %s19, 1
      %p42 = por %p40, %p41
      %p44 = scmp.ne.s32.totalorder %s27, %s43
      %p45 = scmp.eq.s32.totalorder %s19, 0
      %p46 = por %p44, %p45
      %s48 = sadd.s32 %s47, 1
      %p51 = scmp.eq.s32.totalorder %s13, 1
      %p52 = scmp.ne.s32.totalorder %s47, %s49
      %p53 = scmp.eq.s32.totalorder %s13, 0
      %p54 = por %p52, %p53
      %p55 = scmp.ne.s32.totalorder %s47, %s49
      %p56 = scmp.eq.s32.totalorder %s18, 1
      %p57 = por %p55, %p56
      %p58 = scmp.ne.s32.totalorder %s49, %s50
      %p59 = scmp.eq.s32.totalorder %s18, 0
      %p60 = por %p58, %p59
      %p61 = scmp.ne.s32.totalorder %s49, %s50
      %p62 = scmp.eq.s32.totalorder %s19, 1
      %p63 = por %p61, %p62
      %p65 = scmp.ne.s32.totalorder %s50, %s64
      %p66 = scmp.eq.s32.totalorder %s19, 0
      %p67 = por %p65, %p66
      %s68 = ssub.s32 %s13, %s20
      %p69 = scmp.eq.s32.totalorder %s68, 0
      %s71 = sadd.s32 %s70, 1
      %s72 = scalar_select %p69, %s70, %s71
      %p75 = pneg %p69
      %p76 = scmp.eq.s32.totalorder %s13, 1
      %p77 = por %p75, %p76
      %p78 = scmp.ne.s32.totalorder %s70, %s73
      %p79 = scmp.eq.s32.totalorder %s13, 0
      %p80 = por %p78, %p79
      %p81 = scmp.ne.s32.totalorder %s70, %s73
      %p82 = scmp.eq.s32.totalorder %s18, 1
      %p83 = por %p81, %p82
      %p84 = scmp.ne.s32.totalorder %s73, %s74
      %p85 = scmp.eq.s32.totalorder %s18, 0
      %p86 = por %p84, %p85
      %p87 = scmp.ne.s32.totalorder %s73, %s74
      %p88 = scmp.eq.s32.totalorder %s19, 1
      %p89 = por %p87, %p88
      %p91 = scmp.ne.s32.totalorder %s74, %s90
      %p92 = scmp.eq.s32.totalorder %s19, 0
      %p93 = por %p91, %p92
      %s94 = ssub.s32 %s13, %s20
      %p95 = scmp.eq.s32.totalorder %s94, 0
      %s97 = sadd.s32 %s96, 1
      %s98 = scalar_select %p95, %s96, %s97
      %p101 = pneg %p95
      %p102 = scmp.eq.s32.totalorder %s13, 1
      %p103 = por %p101, %p102
      %p104 = scmp.ne.s32.totalorder %s96, %s99
      %p105 = scmp.eq.s32.totalorder %s13, 0
      %p106 = por %p104, %p105
      %p107 = scmp.ne.s32.totalorder %s96, %s99
      %p108 = scmp.eq.s32.totalorder %s18, 1
      %p109 = por %p107, %p108
      %p110 = scmp.ne.s32.totalorder %s99, %s100
      %p111 = scmp.eq.s32.totalorder %s18, 0
      %p112 = por %p110, %p111
      %p113 = scmp.ne.s32.totalorder %s99, %s100
      %p114 = scmp.eq.s32.totalorder %s19, 1
      %p115 = por %p113, %p114
      %p117 = scmp.ne.s32.totalorder %s100, %s116
      %p118 = scmp.eq.s32.totalorder %s19, 0
      %p119 = por %p117, %p118
      %p120 = scmp.le.s32.totalorder 1, %s13
      %p121 = scmp.lt.s32.totalorder %s13, 3
      %p122 = pnand %p120, %p121
      %p123 = pneg %p122
      // Predicated region
      $region9: #{h2gcn_forward.6} parent=5 // pred_check
        _
      $region10: #{h2gcn_forward.6} parent=5 // pred_check_branch
        %125 = sbr.rel (%p122) target = $region12
      $region11: #{h2gcn_forward.6} parent=5 // pred_region
        %s126 = ssub.s32 %s13, 1
        // Predicated region
        $region13: #{h2gcn_forward.6} parent=11 // pred_check
          %p127 = pneg %p60
        $region14: #{h2gcn_forward.6} parent=11 // pred_check_branch
          %129 = sbr.rel (%p127) target = $region16
        $region15: #{h2gcn_forward.6} parent=11 // pred_region
          _
        $region16: #{h2gcn_forward.6} parent=11 // pred_fallthru
          _
      $region12: #{h2gcn_forward.6} parent=5 // pred_fallthru
        _
      %p130 = scmp.lt.s32.totalorder %s13, 2
      // Predicated region
      $region17: #{h2gcn_forward.6} parent=5 // pred_check
        %p131 = pneg %p130
      $region18: #{h2gcn_forward.6} parent=5 // pred_check_branch
        %133 = sbr.rel (%p131) target = $region20
      $region19: #{h2gcn_forward.6} parent=5 // pred_region
        // Predicated region
        $region21: #{h2gcn_forward.6} parent=19 // pred_check
          %p134 = pneg %p33
        $region22: #{h2gcn_forward.6} parent=19 // pred_check_branch
          %136 = sbr.rel (%p134) target = $region24
        $region23: #{h2gcn_forward.6} parent=19 // pred_region
          %s137 = smul.u32 16, %s13
          %p138 = scmp.lt.s32.totalorder %s137, 31
          %s139 = scalar_select %p138, %s137, 31
          %s140 = smul.addr %s139, 4
          %s141 = scalar_lea.vmem %s0, %s140
          %s142 = smul.u32 16, %s13
        $region24: #{h2gcn_forward.6} parent=19 // pred_fallthru
          _
      $region20: #{h2gcn_forward.6} parent=5 // pred_fallthru
        _
      %p143 = scmp.le.s32.totalorder 1, %s13
      %p144 = scmp.lt.s32.totalorder %s13, 3
      %p145 = pnand %p143, %p144
      %p146 = pneg %p145
      // Predicated region
      $region25: #{h2gcn_forward.6} parent=5 // pred_check
        _
      $region26: #{h2gcn_forward.6} parent=5 // pred_check_branch
        %148 = sbr.rel (%p145) target = $region28
      $region27: #{h2gcn_forward.6} parent=5 // pred_region
        %s149 = ssub.s32 %s13, 1
        %s150 = smul.u32 16, %s18
        %p151 = scmp.lt.s32.totalorder %s150, 31
        %s152 = scalar_select %p151, %s150, 31
        %s153 = smul.addr %s152, 4
        %s154 = scalar_lea.vmem %s0, %s153
        %p155 = pneg %p39
        %p156 = pneg %p36
        %p157 = pneg %p60
        %p158 = pneg %p57
        %p159 = pneg %p86
        %p160 = pneg %p83
        %s161 = smul.u32 16, %s18
        %p162 = scmp.lt.s32.totalorder %s161, 31
        %s163 = scalar_select %p162, %s161, 31
        %s164 = smul.addr %s163, 4
        %s165 = scalar_lea.vmem %s2, %s164
        %p166 = pneg %p112
        %p167 = pneg %p109
        %s168 = sand.u32 %s99, 1
        %s169 = scalar_lea.sflag [#allocation3], %s168
        %s170 = sand.u32 %s99, 1
        %s171 = smul.addr %s170, 8
        %s172 = scalar_lea.vmem [#allocation2], %s171
        %s173 = smul.u32 16, %s18
        %p174 = scmp.lt.s32.totalorder %s173, 31
        %s175 = scalar_select %p174, %s173, 31
        %s176 = smul.addr %s175, 4
        %s177 = scalar_lea.vmem %s0, %s176
        %s178 = smul.u32 16, %s18
        %s179 = smul.u32 16, %s18
        %p180 = scmp.lt.s32.totalorder %s179, 31
        %s181 = scalar_select %p180, %s179, 31
        %s182 = smul.addr %s181, 4
        %s183 = scalar_lea.vmem %s2, %s182
        %s184 = smul.u32 16, %s18
        %v186 = vld [vmem:[%s177] sm:$0xf]
        %v187 = vld [vmem:[%s177 + $0x4] sm:$0xf]
        %v188 = vld [vmem:[%s177 + $0x8] sm:$0xf]
        %v189 = vld [vmem:[%s177 + $0xc] sm:$0xf]
        %v190 = vld [vmem:[%s177 + $0x10] sm:$0xf]
        %v191 = vld [vmem:[%s177 + $0x14] sm:$0xf]
        %v192 = vld [vmem:[%s177 + $0x18] sm:$0xf]
        %v193 = vld [vmem:[%s177 + $0x1c] sm:$0xf]
        %v194 = vld [vmem:[%s177 + $0x20] sm:$0xf]
        %v195 = vld [vmem:[%s177 + $0x24] sm:$0xf]
        %v196 = vld [vmem:[%s177 + $0x28] sm:$0xf]
        %v197 = vld [vmem:[%s177 + $0x2c] sm:$0xf]
        %v198 = vld [vmem:[%s177 + $0x30] sm:$0xf]
        %v199 = vld [vmem:[%s177 + $0x34] sm:$0xf]
        %v200 = vld [vmem:[%s177 + $0x38] sm:$0xf]
        %v201 = vld [vmem:[%s177 + $0x3c] sm:$0xf]
        %v202 = vld [vmem:[%s1] sm:$0xf]
        %v203 = vld [vmem:[%s1 + $0x4] sm:$0xf]
        %v204 = vld [vmem:[%s1 + $0x8] sm:$0xf]
        %v205 = vld [vmem:[%s1 + $0xc] sm:$0xf]
        %v206 = vld [vmem:[%s1 + $0x10] sm:$0xf]
        %v207 = vld [vmem:[%s1 + $0x14] sm:$0xf]
        %v208 = vld [vmem:[%s1 + $0x18] sm:$0xf]
        %v209 = vld [vmem:[%s1 + $0x1c] sm:$0xf]
        %v210 = vld [vmem:[%s1 + $0x20] sm:$0xf]
        %v211 = vld [vmem:[%s1 + $0x24] sm:$0xf]
        %v212 = vld [vmem:[%s1 + $0x28] sm:$0xf]
        %v213 = vld [vmem:[%s1 + $0x2c] sm:$0xf]
        %v214 = vld [vmem:[%s1 + $0x30] sm:$0xf]
        %v215 = vld [vmem:[%s1 + $0x34] sm:$0xf]
        %v216 = vld [vmem:[%s1 + $0x38] sm:$0xf]
        %v217 = vld [vmem:[%s1 + $0x3c] sm:$0xf]
        %v234 = vunpack.c.l.b16 %v186
        %v235 = vunpack.c.l.b16 %v187
        %v236 = vunpack.c.l.b16 %v188
        %v237 = vunpack.c.l.b16 %v189
        %v238 = vunpack.c.l.b16 %v190
        %v239 = vunpack.c.l.b16 %v191
        %v240 = vunpack.c.l.b16 %v192
        %v241 = vunpack.c.l.b16 %v193
        %v242 = vunpack.c.l.b16 %v194
        %v243 = vunpack.c.l.b16 %v195
        %v244 = vunpack.c.l.b16 %v196
        %v245 = vunpack.c.l.b16 %v197
        %v246 = vunpack.c.l.b16 %v198
        %v247 = vunpack.c.l.b16 %v199
        %v248 = vunpack.c.l.b16 %v200
        %v249 = vunpack.c.l.b16 %v201
        %v250 = vpack.c.b16 %v235, %v234
        %v251 = vpack.c.b16 %v237, %v236
        %v252 = vpack.c.b16 %v239, %v238
        %v253 = vpack.c.b16 %v241, %v240
        %v254 = vpack.c.b16 %v243, %v242
        %v255 = vpack.c.b16 %v245, %v244
        %v256 = vpack.c.b16 %v247, %v246
        %v257 = vpack.c.b16 %v249, %v248
        %v282 = vunpack.c.l.b16 %v202
        %v283 = vunpack.c.l.b16 %v203
        %v284 = vunpack.c.l.b16 %v204
        %v285 = vunpack.c.l.b16 %v205
        %v286 = vunpack.c.l.b16 %v206
        %v287 = vunpack.c.l.b16 %v207
        %v288 = vunpack.c.l.b16 %v208
        %v289 = vunpack.c.l.b16 %v209
        %v290 = vunpack.c.l.b16 %v210
        %v291 = vunpack.c.l.b16 %v211
        %v292 = vunpack.c.l.b16 %v212
        %v293 = vunpack.c.l.b16 %v213
        %v294 = vunpack.c.l.b16 %v214
        %v295 = vunpack.c.l.b16 %v215
        %v296 = vunpack.c.l.b16 %v216
        %v297 = vunpack.c.l.b16 %v217
        %v298 = vpack.c.b16 %v283, %v282
        %v299 = vpack.c.b16 %v285, %v284
        %v300 = vpack.c.b16 %v287, %v286
        %v301 = vpack.c.b16 %v289, %v288
        %v302 = vpack.c.b16 %v291, %v290
        %v303 = vpack.c.b16 %v293, %v292
        %v304 = vpack.c.b16 %v295, %v294
        %v305 = vpack.c.b16 %v297, %v296
        %314 = vmatprep.subr.bf16.mxu0 0
        %315 = vmatpush1.bf16.msra.mxu0 %v305
        %316 = vmatprep.subr.bf16.mxu0 0
        %317 = vmatpush1.bf16.msra.mxu0 %v304
        %318 = vmatprep.subr.bf16.mxu0 0
        %319 = vmatpush1.bf16.msra.mxu0 %v303
        %320 = vmatprep.subr.bf16.mxu0 0
        %321 = vmatpush1.bf16.msra.mxu0 %v302
        %322 = vmatprep.subr.bf16.mxu0 0
        %323 = vmatpush1.bf16.msra.mxu0 %v301
        %324 = vmatprep.subr.bf16.mxu0 0
        %325 = vmatpush1.bf16.msra.mxu0 %v300
        %326 = vmatprep.subr.bf16.mxu0 0
        %327 = vmatpush1.bf16.msra.mxu0 %v299
        %328 = vmatprep.subr.bf16.mxu0 0
        %329 = vmatpush1.bf16.msra.mxu0 %v298
        %330 = vmatprep.subr.bf16.mxu0 0
        %331 = vmatpush2.bf16.msra.mxu0 0
        %332 = vmatprep.subr.bf16.mxu0 0
        %333 = vmatpush2.bf16.msra.mxu0 0
        %334 = vmatprep.subr.bf16.mxu0 0
        %335 = vmatpush2.bf16.msra.mxu0 0
        %336 = vmatprep.subr.bf16.mxu0 0
        %337 = vmatpush2.bf16.msra.mxu0 0
        %338 = vmatprep.subr.bf16.mxu0 0
        %339 = vmatpush2.bf16.msra.mxu0 0
        %340 = vmatprep.subr.bf16.mxu0 0
        %341 = vmatpush2.bf16.msra.mxu0 0
        %342 = vmatprep.subr.bf16.mxu0 0
        %343 = vmatpush2.bf16.msra.mxu0 0
        %344 = vmatprep.subr.bf16.mxu0 0
        %345 = vmatpush2.bf16.msra.mxu0 0
        %346 = vmatprep.mubr.bf16.mxu0 0
        %347 = vmatmul.mubr.bf16.gmra.mxu0 %v250
        %v348 = vpop.f32.mrf.mxu0
        %v349 = vadd.f32 0.0, %v348
        %v350 = vpop.f32.mrf.mxu0
        %v351 = vpop.f32.mrf.mxu0
        %v352 = vadd.f32 0.0, %v351
        %v353 = vpop.f32.mrf.mxu0
        %354 = vmatprep.mubr.bf16.mxu0 0
        %355 = vmatmul.mubr.bf16.gmra.mxu0 %v251
        %v356 = vpop.f32.mrf.mxu0
        %v357 = vadd.f32 0.0, %v356
        %v358 = vpop.f32.mrf.mxu0
        %v359 = vpop.f32.mrf.mxu0
        %v360 = vadd.f32 0.0, %v359
        %v361 = vpop.f32.mrf.mxu0
        %362 = vmatprep.mubr.bf16.mxu0 0
        %363 = vmatmul.mubr.bf16.gmra.mxu0 %v252
        %v364 = vpop.f32.mrf.mxu0
        %v365 = vadd.f32 0.0, %v364
        %v366 = vpop.f32.mrf.mxu0
        %v367 = vpop.f32.mrf.mxu0
        %v368 = vadd.f32 0.0, %v367
        %v369 = vpop.f32.mrf.mxu0
        %370 = vmatprep.mubr.bf16.mxu0 0
        %371 = vmatmul.mubr.bf16.gmra.mxu0 %v253
        %v372 = vpop.f32.mrf.mxu0
        %v373 = vadd.f32 0.0, %v372
        %v374 = vpop.f32.mrf.mxu0
        %v375 = vpop.f32.mrf.mxu0
        %v376 = vadd.f32 0.0, %v375
        %v377 = vpop.f32.mrf.mxu0
        %378 = vmatprep.mubr.bf16.mxu0 0
        %379 = vmatmul.mubr.bf16.gmra.mxu0 %v254
        %v380 = vpop.f32.mrf.mxu0
        %v381 = vadd.f32 0.0, %v380
        %v382 = vpop.f32.mrf.mxu0
        %v383 = vpop.f32.mrf.mxu0
        %v384 = vadd.f32 0.0, %v383
        %v385 = vpop.f32.mrf.mxu0
        %386 = vmatprep.mubr.bf16.mxu0 0
        %387 = vmatmul.mubr.bf16.gmra.mxu0 %v255
        %v388 = vpop.f32.mrf.mxu0
        %v389 = vadd.f32 0.0, %v388
        %v390 = vpop.f32.mrf.mxu0
        %v391 = vpop.f32.mrf.mxu0
        %v392 = vadd.f32 0.0, %v391
        %v393 = vpop.f32.mrf.mxu0
        %394 = vmatprep.mubr.bf16.mxu0 0
        %395 = vmatmul.mubr.bf16.gmra.mxu0 %v256
        %v396 = vpop.f32.mrf.mxu0
        %v397 = vadd.f32 0.0, %v396
        %v398 = vpop.f32.mrf.mxu0
        %v399 = vpop.f32.mrf.mxu0
        %v400 = vadd.f32 0.0, %v399
        %v401 = vpop.f32.mrf.mxu0
        %402 = vmatprep.mubr.bf16.mxu0 0
        %403 = vmatmul.mubr.bf16.gmra.mxu0 %v257
        %v404 = vpop.f32.mrf.mxu0
        %v405 = vadd.f32 0.0, %v404
        %v406 = vpop.f32.mrf.mxu0
        %v407 = vpop.f32.mrf.mxu0
        %v408 = vadd.f32 0.0, %v407
        %v409 = vpop.f32.mrf.mxu0
        %410 = vdwg.mxu0
        %v411 = vpack.c.bf16 %v352, %v349
        %v412 = vpack.c.bf16 %v360, %v357
        %v413 = vpack.c.bf16 %v368, %v365
        %v414 = vpack.c.bf16 %v376, %v373
        %v415 = vpack.c.bf16 %v384, %v381
        %v416 = vpack.c.bf16 %v392, %v389
        %v417 = vpack.c.bf16 %v400, %v397
        %v418 = vpack.c.bf16 %v408, %v405
        %v427 = vunpack.c.l.b16 %v411
        %v428 = vunpack.c.h.b16 %v411
        %v429 = vunpack.c.l.b16 %v412
        %v430 = vunpack.c.h.b16 %v412
        %v431 = vunpack.c.l.b16 %v413
        %v432 = vunpack.c.h.b16 %v413
        %v433 = vunpack.c.l.b16 %v414
        %v434 = vunpack.c.h.b16 %v414
        %v435 = vunpack.c.l.b16 %v415
        %v436 = vunpack.c.h.b16 %v415
        %v437 = vunpack.c.l.b16 %v416
        %v438 = vunpack.c.h.b16 %v416
        %v439 = vunpack.c.l.b16 %v417
        %v440 = vunpack.c.h.b16 %v417
        %v441 = vunpack.c.l.b16 %v418
        %v442 = vunpack.c.h.b16 %v418
        %v443 = vpack.c.b16 %v427, %v427
        %v444 = vpack.c.b16 %v428, %v428
        %v445 = vpack.c.b16 %v429, %v429
        %v446 = vpack.c.b16 %v430, %v430
        %v447 = vpack.c.b16 %v431, %v431
        %v448 = vpack.c.b16 %v432, %v432
        %v449 = vpack.c.b16 %v433, %v433
        %v450 = vpack.c.b16 %v434, %v434
        %v451 = vpack.c.b16 %v435, %v435
        %v452 = vpack.c.b16 %v436, %v436
        %v453 = vpack.c.b16 %v437, %v437
        %v454 = vpack.c.b16 %v438, %v438
        %v455 = vpack.c.b16 %v439, %v439
        %v456 = vpack.c.b16 %v440, %v440
        %v457 = vpack.c.b16 %v441, %v441
        %v458 = vpack.c.b16 %v442, %v442
        %475 = vst [vmem:[%s183] sm:$0xf] %v443
        %476 = vst [vmem:[%s183 + $0x4] sm:$0xf] %v444
        %477 = vst [vmem:[%s183 + $0x8] sm:$0xf] %v445
        %478 = vst [vmem:[%s183 + $0xc] sm:$0xf] %v446
        %479 = vst [vmem:[%s183 + $0x10] sm:$0xf] %v447
        %480 = vst [vmem:[%s183 + $0x14] sm:$0xf] %v448
        %481 = vst [vmem:[%s183 + $0x18] sm:$0xf] %v449
        %482 = vst [vmem:[%s183 + $0x1c] sm:$0xf] %v450
        %483 = vst [vmem:[%s183 + $0x20] sm:$0xf] %v451
        %484 = vst [vmem:[%s183 + $0x24] sm:$0xf] %v452
        %485 = vst [vmem:[%s183 + $0x28] sm:$0xf] %v453
        %486 = vst [vmem:[%s183 + $0x2c] sm:$0xf] %v454
        %487 = vst [vmem:[%s183 + $0x30] sm:$0xf] %v455
        %488 = vst [vmem:[%s183 + $0x34] sm:$0xf] %v456
        %489 = vst [vmem:[%s183 + $0x38] sm:$0xf] %v457
        %490 = vst [vmem:[%s183 + $0x3c] sm:$0xf] %v458
        %v491 = vunpack.c.l.bf16 %v411
        %v492 = vunpack.c.h.bf16 %v411
        %v493 = vunpack.c.l.bf16 %v412
        %v494 = vunpack.c.h.bf16 %v412
        %v495 = vunpack.c.l.bf16 %v413
        %v496 = vunpack.c.h.bf16 %v413
        %v497 = vunpack.c.l.bf16 %v414
        %v498 = vunpack.c.h.bf16 %v414
        %v499 = vunpack.c.l.bf16 %v415
        %v500 = vunpack.c.h.bf16 %v415
        %v501 = vunpack.c.l.bf16 %v416
        %v502 = vunpack.c.h.bf16 %v416
        %v503 = vunpack.c.l.bf16 %v417
        %v504 = vunpack.c.h.bf16 %v417
        %v505 = vunpack.c.l.bf16 %v418
        %v506 = vunpack.c.h.bf16 %v418
        %v507 = vadd.f32 %v491, %v492
        %v508 = vadd.f32 %v507, %v493
        %v509 = vadd.f32 %v508, %v494
        %v510 = vadd.f32 %v509, %v495
        %v511 = vadd.f32 %v510, %v496
        %v512 = vadd.f32 %v511, %v497
        %v513 = vadd.f32 %v512, %v498
        %v514 = vadd.f32 %v513, %v499
        %v515 = vadd.f32 %v514, %v500
        %v516 = vadd.f32 %v515, %v501
        %v517 = vadd.f32 %v516, %v502
        %v518 = vadd.f32 %v517, %v503
        %v519 = vadd.f32 %v518, %v504
        %v520 = vadd.f32 %v519, %v505
        %v521 = vadd.f32 %v520, %v506
        %v522 = vrot.slane %v521, 4
        %v523 = vadd.f32 %v521, %v522
        %v524 = vrot.slane %v523, 2
        %v525 = vadd.f32 %v523, %v524
        %v526 = vrot.slane %v525, 1
        %v527 = vadd.f32 %v525, %v526
        %v528 = vmul.f32 %v491, %v491
        %v529 = vmul.f32 %v492, %v492
        %v530 = vmul.f32 %v493, %v493
        %v531 = vmul.f32 %v494, %v494
        %v532 = vmul.f32 %v495, %v495
        %v533 = vmul.f32 %v496, %v496
        %v534 = vmul.f32 %v497, %v497
        %v535 = vmul.f32 %v498, %v498
        %v536 = vmul.f32 %v499, %v499
        %v537 = vmul.f32 %v500, %v500
        %v538 = vmul.f32 %v501, %v501
        %v539 = vmul.f32 %v502, %v502
        %v540 = vmul.f32 %v503, %v503
        %v541 = vmul.f32 %v504, %v504
        %v542 = vmul.f32 %v505, %v505
        %v543 = vmul.f32 %v506, %v506
        %v544 = vadd.f32 %v528, %v529
        %v545 = vadd.f32 %v544, %v530
        %v546 = vadd.f32 %v545, %v531
        %v547 = vadd.f32 %v546, %v532
        %v548 = vadd.f32 %v547, %v533
        %v549 = vadd.f32 %v548, %v534
        %v550 = vadd.f32 %v549, %v535
        %v551 = vadd.f32 %v550, %v536
        %v552 = vadd.f32 %v551, %v537
        %v553 = vadd.f32 %v552, %v538
        %v554 = vadd.f32 %v553, %v539
        %v555 = vadd.f32 %v554, %v540
        %v556 = vadd.f32 %v555, %v541
        %v557 = vadd.f32 %v556, %v542
        %v558 = vadd.f32 %v557, %v543
        %v559 = vrot.slane %v558, 4
        %v560 = vadd.f32 %v558, %v559
        %v561 = vrot.slane %v560, 2
        %v562 = vadd.f32 %v560, %v561
        %v563 = vrot.slane %v562, 1
        %v564 = vadd.f32 %v562, %v563
        %vm565 = vcmask 1040384
        %v566 = vsel %vm565, %v527, %v564
        %vm567 = vcmask 1041408
        %v568 = vsel %vm567, %v566, 0.0
        %569 = vst [vmem:[%s172] sm:$0xff] %v568
        %s570 = smul.u32 16, %s18
        %p571 = scmp.lt.s32.totalorder %s570, 31
        %s572 = scalar_select %p571, %s570, 31
        %s573 = smul.addr %s572, 4
        %s574 = scalar_lea.vmem %s2, %s573
        %s575 = sand.u32 %s99, 1
        %s576 = scalar_lea.sflag [#allocation3], %s575
        %s577 = sand.u32 %s99, 1
        %s578 = smul.addr %s577, 8
        %s579 = scalar_lea.vmem [#allocation2], %s578
        // Predicated region
        $region29: #{h2gcn_forward.6} parent=27 // pred_check
          %p580 = pneg %p83
        $region30: #{h2gcn_forward.6} parent=27 // pred_check_branch
          %582 = sbr.rel (%p580) target = $region32
        $region31: #{h2gcn_forward.6} parent=27 // pred_region
          %s583 = smul.u32 16, %s18
        $region32: #{h2gcn_forward.6} parent=27 // pred_fallthru
          _
        // Predicated region
        $region33: #{h2gcn_forward.6} parent=27 // pred_check
          %p584 = pneg %p109
        $region34: #{h2gcn_forward.6} parent=27 // pred_check_branch
          %586 = sbr.rel (%p584) target = $region36
        $region35: #{h2gcn_forward.6} parent=27 // pred_region
          %s588 = ssub.s32 128, 128
          %589 = vsyncadd %s576, %s588
          %s590 = smul.addr %s18, 128
          %s591 = scalar_lea.hbm %s3, %s590
          %s593 = sshll.u32 %s579, 4
          %s594 = int_to_ptr.vmem [resolvable:$true] %s593
          %596 = dma.vmem_to_hbm [thread:$0]  %s594, 128, %s591, %s576
        $region36: #{h2gcn_forward.6} parent=27 // pred_fallthru
          _
      $region28: #{h2gcn_forward.6} parent=5 // pred_fallthru
        _
      %p597 = scmp.le.s32.totalorder 2, %s13
      // Predicated region
      $region37: #{h2gcn_forward.6} parent=5 // pred_check
        %p598 = pneg %p597
      $region38: #{h2gcn_forward.6} parent=5 // pred_check_branch
        %600 = sbr.rel (%p598) target = $region40
      $region39: #{h2gcn_forward.6} parent=5 // pred_region
        %s601 = ssub.s32 %s13, 2
        // Predicated region
        $region41: #{h2gcn_forward.6} parent=39 // pred_check
          %p602 = pneg %p89
        $region42: #{h2gcn_forward.6} parent=39 // pred_check_branch
          %604 = sbr.rel (%p602) target = $region44
        $region43: #{h2gcn_forward.6} parent=39 // pred_region
          %s605 = smul.u32 16, %s19
          %p606 = scmp.lt.s32.totalorder %s605, 31
          %s607 = scalar_select %p606, %s605, 31
          %s608 = smul.addr %s607, 4
          %s609 = scalar_lea.vmem %s2, %s608
        $region44: #{h2gcn_forward.6} parent=39 // pred_fallthru
          _
        // Predicated region
        $region45: #{h2gcn_forward.6} parent=39 // pred_check
          %p610 = pneg %p115
        $region46: #{h2gcn_forward.6} parent=39 // pred_check_branch
          %612 = sbr.rel (%p610) target = $region48
        $region47: #{h2gcn_forward.6} parent=39 // pred_region
          %s613 = sand.u32 %s100, 1
          %s614 = scalar_lea.sflag [#allocation3], %s613
          %s615 = sand.u32 %s100, 1
          %s616 = smul.addr %s615, 8
          %s617 = scalar_lea.vmem [#allocation2], %s616
          %618 = dma.done %s614, 128
        $region48: #{h2gcn_forward.6} parent=39 // pred_fallthru
          _
      $region40: #{h2gcn_forward.6} parent=5 // pred_fallthru
        _
    $region6: #{h2gcn_forward.6} parent=1 // loop_footer
      %s17 = sadd.s32 1, %s13
    $region7: #{h2gcn_forward.6} parent=1 // loop_footer_branch
      %12 = sbr.rel target = $region3
    $region8: #{h2gcn_forward.6} parent=1 // loop_exit
      _
    %619 = vsyncpa [#allocation3], 1
    %s620 = scalar_lea.sflag [#allocation3], 1
    %621 = vsyncpa %s620, 1

// kernel: h2gcn_forward.7
$region0: #{h2gcn_forward.7}
  #allocation0 [shape = 'u32[]', space=smem, size = 0x4, offset = 0x4, fixed_abs, tag = 'smem constant byte address 0x4 - core index']
  #allocation1 [shape = 'u32[144,128]{1,0:T(1,128)}', space=vmem, size = 0x12000, scoped, tag = 'internal scratch']
  %s0 = inlined_call_operand.vmem [shape: bf16[16,256], index: 0, kind: input, shape index: {}]
  %s1 = inlined_call_operand.vmem [shape: bf16[256,128], index: 1, kind: input, shape index: {}]
  %s2 = inlined_call_operand.vmem [shape: f32[1,128], index: 2, kind: input, shape index: {}]
  %s3 = inlined_call_operand.vmem [shape: f32[16,128], index: 3, kind: output, shape index: {}]
  %s4 = sld [smem:[#allocation0]]
  $region22: #{h2gcn_forward.7} parent=0
    _
  %s6 = ssub.s32 1, %s4
  %s7 = scalar_select 0, %s6, %s4
  // Predicated region
  $region2: #{h2gcn_forward.7} parent=0 // pred_check
    _
  $region3: #{h2gcn_forward.7} parent=0 // pred_check_branch
    %9 = sbr.rel (0) target = $region5
  $region4: #{h2gcn_forward.7} parent=0 // pred_region
    _
  $region5: #{h2gcn_forward.7} parent=0 // pred_fallthru
    _
  // Predicated region
  $region6: #{h2gcn_forward.7} parent=0 // pred_check
    _
  $region7: #{h2gcn_forward.7} parent=0 // pred_check_branch
    %11 = sbr.rel (0) target = $region9
  $region8: #{h2gcn_forward.7} parent=0 // pred_region
    _
  $region9: #{h2gcn_forward.7} parent=0 // pred_fallthru
    _
  // Predicated region
  $region10: #{h2gcn_forward.7} parent=0 // pred_check
    _
  $region11: #{h2gcn_forward.7} parent=0 // pred_check_branch
    %13 = sbr.rel (0) target = $region13
  $region12: #{h2gcn_forward.7} parent=0 // pred_region
    _
  $region13: #{h2gcn_forward.7} parent=0 // pred_fallthru
    _
  %v15 = vld [vmem:[%s0] sm:$0xff]
  %v16 = vld [vmem:[%s0 + $0x8] sm:$0xff]
  %v17 = vld [vmem:[%s1] sm:$0xf]
  %v18 = vld [vmem:[%s1 + $0x4] sm:$0xf]
  %v19 = vld [vmem:[%s1 + $0x8] sm:$0xf]
  %v20 = vld [vmem:[%s1 + $0xc] sm:$0xf]
  %v21 = vld [vmem:[%s1 + $0x10] sm:$0xf]
  %v22 = vld [vmem:[%s1 + $0x14] sm:$0xf]
  %v23 = vld [vmem:[%s1 + $0x18] sm:$0xf]
  %v24 = vld [vmem:[%s1 + $0x1c] sm:$0xf]
  %v25 = vld [vmem:[%s1 + $0x20] sm:$0xf]
  %v26 = vld [vmem:[%s1 + $0x24] sm:$0xf]
  %v27 = vld [vmem:[%s1 + $0x28] sm:$0xf]
  %v28 = vld [vmem:[%s1 + $0x2c] sm:$0xf]
  %v29 = vld [vmem:[%s1 + $0x30] sm:$0xf]
  %v30 = vld [vmem:[%s1 + $0x34] sm:$0xf]
  %v31 = vld [vmem:[%s1 + $0x38] sm:$0xf]
  %v32 = vld [vmem:[%s1 + $0x3c] sm:$0xf]
  %v33 = vld [vmem:[%s1 + $0x40] sm:$0xf]
  %v34 = vld [vmem:[%s1 + $0x44] sm:$0xf]
  %v35 = vld [vmem:[%s1 + $0x48] sm:$0xf]
  %v36 = vld [vmem:[%s1 + $0x4c] sm:$0xf]
  %v37 = vld [vmem:[%s1 + $0x50] sm:$0xf]
  %v38 = vld [vmem:[%s1 + $0x54] sm:$0xf]
  %v39 = vld [vmem:[%s1 + $0x58] sm:$0xf]
  %v40 = vld [vmem:[%s1 + $0x5c] sm:$0xf]
  %v41 = vld [vmem:[%s1 + $0x60] sm:$0xf]
  %v42 = vld [vmem:[%s1 + $0x64] sm:$0xf]
  %v43 = vld [vmem:[%s1 + $0x68] sm:$0xf]
  %v44 = vld [vmem:[%s1 + $0x6c] sm:$0xf]
  %v45 = vld [vmem:[%s1 + $0x70] sm:$0xf]
  %v46 = vld [vmem:[%s1 + $0x74] sm:$0xf]
  %v47 = vld [vmem:[%s1 + $0x78] sm:$0xf]
  %v48 = vld [vmem:[%s1 + $0x7c] sm:$0xf]
  %v49 = vld [vmem:[%s2] sm:$0x1]
  %v51 = vlaneseq
  %v52 = vshrl.u32 %v51, 7
  %v53 = vsub.s32 0, %v52
  %v54 = vrot.slane %v49, %v53
  %v58 = vunpack.c.l.b16 %v15
  %v59 = vunpack.c.h.b16 %v15
  %v60 = vunpack.c.l.b16 %v16
  %v61 = vunpack.c.h.b16 %v16
  %v62 = vpack.c.b16 %v60, %v58
  %v63 = vpack.c.b16 %v61, %v59
  %v98 = vunpack.c.l.b16 %v17
  %v99 = vunpack.c.l.b16 %v18
  %v100 = vunpack.c.l.b16 %v19
  %v101 = vunpack.c.l.b16 %v20
  %v102 = vunpack.c.l.b16 %v21
  %v103 = vunpack.c.l.b16 %v22
  %v104 = vunpack.c.l.b16 %v23
  %v105 = vunpack.c.l.b16 %v24
  %v106 = vunpack.c.l.b16 %v25
  %v107 = vunpack.c.l.b16 %v26
  %v108 = vunpack.c.l.b16 %v27
  %v109 = vunpack.c.l.b16 %v28
  %v110 = vunpack.c.l.b16 %v29
  %v111 = vunpack.c.l.b16 %v30
  %v112 = vunpack.c.l.b16 %v31
  %v113 = vunpack.c.l.b16 %v32
  %v114 = vunpack.c.l.b16 %v33
  %v115 = vunpack.c.l.b16 %v34
  %v116 = vunpack.c.l.b16 %v35
  %v117 = vunpack.c.l.b16 %v36
  %v118 = vunpack.c.l.b16 %v37
  %v119 = vunpack.c.l.b16 %v38
  %v120 = vunpack.c.l.b16 %v39
  %v121 = vunpack.c.l.b16 %v40
  %v122 = vunpack.c.l.b16 %v41
  %v123 = vunpack.c.l.b16 %v42
  %v124 = vunpack.c.l.b16 %v43
  %v125 = vunpack.c.l.b16 %v44
  %v126 = vunpack.c.l.b16 %v45
  %v127 = vunpack.c.l.b16 %v46
  %v128 = vunpack.c.l.b16 %v47
  %v129 = vunpack.c.l.b16 %v48
  %v130 = vpack.c.b16 %v99, %v98
  %v131 = vpack.c.b16 %v101, %v100
  %v132 = vpack.c.b16 %v103, %v102
  %v133 = vpack.c.b16 %v105, %v104
  %v134 = vpack.c.b16 %v107, %v106
  %v135 = vpack.c.b16 %v109, %v108
  %v136 = vpack.c.b16 %v111, %v110
  %v137 = vpack.c.b16 %v113, %v112
  %v138 = vpack.c.b16 %v115, %v114
  %v139 = vpack.c.b16 %v117, %v116
  %v140 = vpack.c.b16 %v119, %v118
  %v141 = vpack.c.b16 %v121, %v120
  %v142 = vpack.c.b16 %v123, %v122
  %v143 = vpack.c.b16 %v125, %v124
  %v144 = vpack.c.b16 %v127, %v126
  %v145 = vpack.c.b16 %v129, %v128
  %162 = vmatprep.subr.bf16.mxu0 0
  %163 = vmatpush1.bf16.msra.mxu0 %v137
  %164 = vmatprep.subr.bf16.mxu0 0
  %165 = vmatpush1.bf16.msra.mxu0 %v136
  %166 = vmatprep.subr.bf16.mxu0 0
  %167 = vmatpush1.bf16.msra.mxu0 %v135
  %168 = vmatprep.subr.bf16.mxu0 0
  %169 = vmatpush1.bf16.msra.mxu0 %v134
  %170 = vmatprep.subr.bf16.mxu0 0
  %171 = vmatpush1.bf16.msra.mxu0 %v133
  %172 = vmatprep.subr.bf16.mxu0 0
  %173 = vmatpush1.bf16.msra.mxu0 %v132
  %174 = vmatprep.subr.bf16.mxu0 0
  %175 = vmatpush1.bf16.msra.mxu0 %v131
  %176 = vmatprep.subr.bf16.mxu0 0
  %177 = vmatpush1.bf16.msra.mxu0 %v130
  %178 = vmatprep.subr.bf16.mxu0 0
  %179 = vmatpush2.bf16.msra.mxu0 %v145
  %180 = vmatprep.subr.bf16.mxu0 0
  %181 = vmatpush2.bf16.msra.mxu0 %v144
  %182 = vmatprep.subr.bf16.mxu0 0
  %183 = vmatpush2.bf16.msra.mxu0 %v143
  %184 = vmatprep.subr.bf16.mxu0 0
  %185 = vmatpush2.bf16.msra.mxu0 %v142
  %186 = vmatprep.subr.bf16.mxu0 0
  %187 = vmatpush2.bf16.msra.mxu0 %v141
  %188 = vmatprep.subr.bf16.mxu0 0
  %189 = vmatpush2.bf16.msra.mxu0 %v140
  %190 = vmatprep.subr.bf16.mxu0 0
  %191 = vmatpush2.bf16.msra.mxu0 %v139
  %192 = vmatprep.subr.bf16.mxu0 0
  %193 = vmatpush2.bf16.msra.mxu0 %v138
  %194 = vmatprep.mubr.bf16.mxu0 %v63
  %195 = vmatmul.mubr.bf16.gmra.mxu0 %v62
  %v196 = vpop.f32.mrf.mxu0
  %v197 = vadd.f32 %v54, %v196
  %v198 = vpop.f32.mrf.mxu0
  %v199 = vpop.f32.mrf.mxu0
  %v200 = vadd.f32 %v54, %v199
  %v201 = vpop.f32.mrf.mxu0
  %202 = vdwg.mxu0
  %203 = vst [vmem:[%s3] sm:$0xff] %v197
  %204 = vst [vmem:[%s3 + $0x8] sm:$0xff] %v200
  // Predicated region
  $region14: #{h2gcn_forward.7} parent=0 // pred_check
    _
  $region15: #{h2gcn_forward.7} parent=0 // pred_check_branch
    %206 = sbr.rel (0) target = $region17
  $region16: #{h2gcn_forward.7} parent=0 // pred_region
    _
  $region17: #{h2gcn_forward.7} parent=0 // pred_fallthru
    _
  // Predicated region
  $region18: #{h2gcn_forward.7} parent=0 // pred_check
    _
  $region19: #{h2gcn_forward.7} parent=0 // pred_check_branch
    %208 = sbr.rel (0) target = $region21
  $region20: #{h2gcn_forward.7} parent=0 // pred_region
    _
  $region21: #{h2gcn_forward.7} parent=0 // pred_fallthru
    _

</llo_original>
